<compile_context>
chip_gen: v6e
topology: v6e:2x2x1
jax: 0.10.0
libtpu: 0.0.40
codegen_flags: <defaults>
</compile_context>

<pallas_src>
import functools

import jax
import jax.numpy as jnp
from jax import lax
from jax.experimental import pallas as pl
from jax.experimental.pallas import tpu as pltpu


def _round_up(n, m):
    return ((n + m - 1) // m) * m


# ---------------------------------------------------------------------------
# Fused encoder kernel: conv+lrelu + ResBlock, repeated for every stage.
# ---------------------------------------------------------------------------
def _encoder_kernel(x_ref, w0_ref, wr_ref, b_ref, o_ref, *, seq_len, n_stages):
    """One tile of whole sequences through the full VQEncoderV6 stack.

    x_ref : (M, Cin_p)                 flattened (batch_tile * T) input rows
    w0_ref: (3*Cin_p, Cp)              stage-0 entry conv weight (im2col layout)
    wr_ref: (3*n_stages - 1, 3*Cp, Cp) remaining conv weights (im2col layout)
    b_ref : (3*n_stages, Cp)           all biases
    o_ref : (M, Cp)
    """
    x = x_ref[...]
    m = x.shape[0]

    # Per-sequence boundary masks (rows are sequence-major with period seq_len).
    row = lax.broadcasted_iota(jnp.int32, (m, 1), 0)
    pos = row % seq_len
    is_first = pos == 0
    is_last = pos == (seq_len - 1)

    def conv3(h, w_flat, b_row):
        # k=3, pad=1 "same" conv as ONE matmul on [h(t-1) | h(t) | h(t+1)].
        # pltpu.roll wraps across the tile; boundary rows are masked to the
        # zero padding the conv expects.  roll by (m-1) == roll by -1.
        h_prev = jnp.where(is_first, 0.0, pltpu.roll(h, 1, axis=0))
        h_next = jnp.where(is_last, 0.0, pltpu.roll(h, m - 1, axis=0))
        h3 = jnp.concatenate([h_prev, h, h_next], axis=-1)        # (M, 3*C)
        return jnp.dot(h3, w_flat, preferred_element_type=jnp.float32) + b_row

    def lrelu(v):
        return jnp.where(v >= 0, v, 0.2 * v)

    # Stage 0 entry conv (input channel count may differ from vae_length).
    h = lrelu(conv3(x, w0_ref[...], b_ref[0:1, :]))

    j = 0
    for s in range(n_stages):
        if s > 0:
            h = lrelu(conv3(h, wr_ref[j], b_ref[3 * s:3 * s + 1, :]))
            j += 1
        skip = h                                   # snapshot before ResBlock
        h2 = lrelu(conv3(h, wr_ref[j], b_ref[3 * s + 1:3 * s + 2, :]))
        j += 1
        h = conv3(h2, wr_ref[j], b_ref[3 * s + 2:3 * s + 3, :]) + skip
        j += 1

    o_ref[...] = h.astype(o_ref.dtype)


def _pick_batches_per_tile(batch, seq_len, cin_p, cp, itemsize,
                           budget_bytes=24 * 1024 * 1024):
    """Largest divisor of `batch` whose tile fits a conservative VMEM budget."""
    candidates = [bb for bb in range(batch, 0, -1)
                  if batch % bb == 0 and (bb == batch or (bb * seq_len) % 8 == 0)]

    def tile_bytes(bb):
        m = bb * seq_len
        # rough live set: input block + im2col buffer + h/skip/h2 + output block,
        # times 2 for the double-buffered in/out pipeline.
        return 2 * m * (cin_p + 3 * max(cin_p, cp) + 4 * cp) * itemsize

    for bb in candidates:
        if tile_bytes(bb) <= budget_bytes:
            return bb
    return candidates[-1]


# ---------------------------------------------------------------------------
# VQEncoderV6 forward — one fused pallas_call for the whole encoder.
# ---------------------------------------------------------------------------
def vq_encoder_v6_forward(x, params):
    """x: (B, T, vae_test_dim)  ->  (B, T, vae_length)."""
    batch, seq_len, cin = x.shape
    n_stages = len(params)
    cout = params[0]["conv_w"].shape[-1]
    dtype = x.dtype
    itemsize = jnp.dtype(dtype).itemsize

    cin_p = _round_up(cin, 128)     # lane-dense input channels
    cp = _round_up(cout, 128)       # lane-dense hidden/output channels

    # ---- pack inputs / weights into lane-dense, im2col-friendly layouts ----
    x_flat = jnp.pad(x, ((0, 0), (0, 0), (0, cin_p - cin)))
    x_flat = x_flat.reshape(batch * seq_len, cin_p)

    def pad_w(w, c_from, c_to):
        # (3, c_from, cout) -> (3*c_to, cp); tap k occupies rows [k*c_to, (k+1)*c_to)
        w = jnp.pad(w, ((0, 0), (0, c_to - c_from), (0, cp - cout)))
        return w.reshape(3 * c_to, cp).astype(dtype)

    def pad_b(b):
        return jnp.pad(b.reshape(-1), (0, cp - cout)).astype(dtype)

    w0 = pad_w(params[0]["conv_w"], cin, cin_p)
    w_rest = []
    biases = [pad_b(params[0]["conv_b"])]
    for s, stage in enumerate(params):
        if s > 0:
            w_rest.append(pad_w(stage["conv_w"], cout, cp))
            biases.append(pad_b(stage["conv_b"]))
        w_rest.append(pad_w(stage["res_w1"], cout, cp))
        biases.append(pad_b(stage["res_b1"]))
        w_rest.append(pad_w(stage["res_w2"], cout, cp))
        biases.append(pad_b(stage["res_b2"]))
    w_rest = jnp.stack(w_rest)       # (3*n_stages - 1, 3*cp, cp)
    biases = jnp.stack(biases)       # (3*n_stages, cp)

    bb = _pick_batches_per_tile(batch, seq_len, cin_p, cp, itemsize)
    m_tile = bb * seq_len
    grid = (batch // bb,)

    kernel = functools.partial(_encoder_kernel, seq_len=seq_len,
                               n_stages=n_stages)

    out_flat = pl.pallas_call(
        kernel,
        out_shape=jax.ShapeDtypeStruct((batch * seq_len, cp), dtype),
        grid=grid,
        in_specs=[
            pl.BlockSpec((m_tile, cin_p), lambda i: (i, 0)),
            pl.BlockSpec((3 * cin_p, cp), lambda i: (0, 0)),
            pl.BlockSpec((3 * n_stages - 1, 3 * cp, cp), lambda i: (0, 0, 0)),
            pl.BlockSpec((3 * n_stages, cp), lambda i: (0, 0)),
        ],
        out_specs=pl.BlockSpec((m_tile, cp), lambda i: (i, 0)),
        compiler_params=pltpu.CompilerParams(
            dimension_semantics=("parallel",),   # v7x: shard tiles across 2 TCs
            vmem_limit_bytes=48 * 1024 * 1024,
        ),
    )(x_flat, w0, w_rest, biases)

    return out_flat.reshape(batch, seq_len, cp)[:, :, :cout]


# ---------------------------------------------------------------------------
# Parameter init (deterministic, synthetic — stands in for init_weight)
# ---------------------------------------------------------------------------
def init_params(key, vae_test_dim, vae_length, vae_layer):
    # TODO(synk): init_weight's exact scheme (likely xavier) is not reproduced;
    # weights are synthetic deterministic normals of the correct shapes.
    params = []
    in_c = vae_test_dim
    for _ in range(vae_layer):
        out_c = vae_length
        keys = jax.random.split(key, 7)
        key = keys[0]
        scale = 0.1
        params.append({
            "conv_w": scale * jax.random.normal(keys[1], (3, in_c, out_c), jnp.float32),
            "conv_b": scale * jax.random.normal(keys[2], (1, out_c), jnp.float32),
            "res_w1": scale * jax.random.normal(keys[3], (3, out_c, out_c), jnp.float32),
            "res_b1": scale * jax.random.normal(keys[4], (1, out_c), jnp.float32),
            "res_w2": scale * jax.random.normal(keys[5], (3, out_c, out_c), jnp.float32),
            "res_b2": scale * jax.random.normal(keys[6], (1, out_c), jnp.float32),
        })
        in_c = out_c
    return params


# ---------------------------------------------------------------------------
# Pure-JAX reference (correctness check for the Pallas kernel)
# ---------------------------------------------------------------------------
def _conv_ref(x, w, b):
    xp = jnp.pad(x, ((0, 0), (1, 1), (0, 0)))
    return (jnp.einsum("btc,cd->btd", xp[:, :-2], w[0])
            + jnp.einsum("btc,cd->btd", xp[:, 1:-1], w[1])
            + jnp.einsum("btc,cd->btd", xp[:, 2:], w[2])
            + b)


def _lrelu_ref(x):
    return jnp.where(x >= 0, x, 0.2 * x)


def forward_ref(x, params):
    h = x
    for s in params:
        h = _lrelu_ref(_conv_ref(h, s["conv_w"], s["conv_b"]))
        skip = h
        h2 = _lrelu_ref(_conv_ref(h, s["res_w1"], s["res_b1"]))
        h = _conv_ref(h2, s["res_w2"], s["res_b2"]) + skip
    return h


# ---------------------------------------------------------------------------
if __name__ == "__main__":
    # args: vae_test_dim=16 (input feature dim), vae_length=32, vae_layer=2
    B, T = 2, 8
    VAE_TEST_DIM, VAE_LENGTH, VAE_LAYER = 16, 32, 2

    key = jax.random.PRNGKey(0)
    kx, kp = jax.random.split(key)
    x = jax.random.normal(kx, (B, T, VAE_TEST_DIM), jnp.float32)
    params = init_params(kp, VAE_TEST_DIM, VAE_LENGTH, VAE_LAYER)

    out = vq_encoder_v6_forward(x, params)
    out = jax.block_until_ready(out)

    ref = forward_ref(x, params)
    assert out.shape == (B, T, VAE_LENGTH), out.shape
    assert jnp.allclose(out, ref, rtol=1e-4, atol=1e-4), "mismatch vs reference"

    print("KERNEL_OK")
</pallas_src>

<mosaic_0001>
module attributes {stable_mosaic.version = 11 : i64} {
  func.func @_encoder_kernel(%arg0: i32, %arg1: memref<16x128xf32, #tpu.memory_space<vmem>>, %arg2: memref<384x128xf32, #tpu.memory_space<vmem>>, %arg3: memref<5x384x128xf32, #tpu.memory_space<vmem>>, %arg4: memref<6x128xf32, #tpu.memory_space<vmem>>, %arg5: memref<16x128xf32, #tpu.memory_space<vmem>>) attributes {dimension_semantics = [#tpu.dimension_semantics<parallel>], iteration_bounds = array<i64: 1>, scalar_prefetch = 0 : i64, scratch_operands = 0 : i64, tpu.core_type = #tpu.core_type<tc>, window_params = [{transform_indices = @transform_0, window_bounds = array<i64: 16, 128>}, {pipeline_mode = #tpu.pipeline_mode<synchronous>, transform_indices = @transform_1, window_bounds = array<i64: 384, 128>}, {pipeline_mode = #tpu.pipeline_mode<synchronous>, transform_indices = @transform_2, window_bounds = array<i64: 5, 384, 128>}, {pipeline_mode = #tpu.pipeline_mode<synchronous>, transform_indices = @transform_3, window_bounds = array<i64: 6, 128>}, {transform_indices = @transform_4, window_bounds = array<i64: 16, 128>}]} {
    %c0 = arith.constant 0 : index
    %c0_0 = arith.constant 0 : index
    %0 = vector.load %arg1[%c0, %c0_0] : memref<16x128xf32, #tpu.memory_space<vmem>>, vector<16x128xf32>
    %1 = tpu.iota {dimensions = array<i32: 0>} : vector<16x1xi32>
    %c8_i32 = arith.constant 8 : i32
    %c0_i32 = arith.constant 0 : i32
    %2 = arith.cmpi eq, %c8_i32, %c0_i32 : i32
    %c1_i32 = arith.constant 1 : i32
    %3 = arith.select %2, %c1_i32, %c8_i32 : i32
    %4 = vector.broadcast %3 : i32 to vector<16x1xi32>
    %5 = arith.remsi %1, %4 : vector<16x1xi32>
    %c0_i32_1 = arith.constant 0 : i32
    %6 = vector.broadcast %c0_i32_1 : i32 to vector<16x1xi32>
    %7 = arith.cmpi ne, %5, %6 : vector<16x1xi32>
    %c0_i32_2 = arith.constant 0 : i32
    %8 = vector.broadcast %c0_i32_2 : i32 to vector<16x1xi32>
    %9 = arith.cmpi slt, %5, %8 : vector<16x1xi32>
    %c0_i32_3 = arith.constant 0 : i32
    %10 = arith.cmpi slt, %3, %c0_i32_3 : i32
    %11 = vector.broadcast %10 : i1 to vector<16x1xi1>
    %12 = vector.broadcast %11 : vector<16x1xi1> to vector<16x1xi1>
    %13 = arith.xori %9, %12 : vector<16x1xi1>
    %14 = arith.andi %13, %7 : vector<16x1xi1>
    %15 = vector.broadcast %3 : i32 to vector<16x1xi32>
    %16 = arith.addi %5, %15 : vector<16x1xi32>
    %17 = arith.select %14, %16, %5 : vector<16x1xi1>, vector<16x1xi32>
    %c0_i32_4 = arith.constant 0 : i32
    %18 = vector.broadcast %c0_i32_4 : i32 to vector<16x1xi32>
    %19 = arith.cmpi eq, %17, %18 : vector<16x1xi32>
    %c7_i32 = arith.constant 7 : i32
    %20 = vector.broadcast %c7_i32 : i32 to vector<16x1xi32>
    %21 = arith.cmpi eq, %17, %20 : vector<16x1xi32>
    %c0_5 = arith.constant 0 : index
    %c0_6 = arith.constant 0 : index
    %22 = vector.load %arg2[%c0_5, %c0_6] : memref<384x128xf32, #tpu.memory_space<vmem>>, vector<384x128xf32>
    %c0_7 = arith.constant 0 : index
    %c0_8 = arith.constant 0 : index
    %23 = vector.load %arg4[%c0_7, %c0_8] : memref<6x128xf32, #tpu.memory_space<vmem>>, vector<1x128xf32>
    %c1_i32_9 = arith.constant 1 : i32
    %24 = tpu.dynamic_rotate %0 by %c1_i32_9 dim 0 : vector<16x128xf32>, i32 -> vector<16x128xf32>
    %cst = arith.constant 0.000000e+00 : f32
    %25 = vector.shape_cast %19 : vector<16x1xi1> to vector<16x1xi1>
    %26 = vector.broadcast %25 : vector<16x1xi1> to vector<16x128xi1>
    %27 = vector.broadcast %cst : f32 to vector<16x128xf32>
    %28 = arith.select %26, %27, %24 : vector<16x128xi1>, vector<16x128xf32>
    %c15_i32 = arith.constant 15 : i32
    %29 = tpu.dynamic_rotate %0 by %c15_i32 dim 0 : vector<16x128xf32>, i32 -> vector<16x128xf32>
    %cst_10 = arith.constant 0.000000e+00 : f32
    %30 = vector.shape_cast %21 : vector<16x1xi1> to vector<16x1xi1>
    %31 = vector.broadcast %30 : vector<16x1xi1> to vector<16x128xi1>
    %32 = vector.broadcast %cst_10 : f32 to vector<16x128xf32>
    %33 = arith.select %31, %32, %29 : vector<16x128xi1>, vector<16x128xf32>
    %34 = tpu.concatenate %28, %0, %33 in 1 : vector<16x128xf32>, vector<16x128xf32>, vector<16x128xf32> -> vector<16x384xf32>
    %cst_11 = arith.constant dense<0.000000e+00> : vector<16x128xf32>
    %35 = tpu.matmul %34, %22, %cst_11 {dimension_numbers = #tpu.dot_dimension_numbers<[1], [0], [0], [1], [0, 0, 1, 1], [], []>} : vector<16x384xf32>, vector<384x128xf32>, vector<16x128xf32> -> vector<16x128xf32>
    %36 = vector.broadcast %23 : vector<1x128xf32> to vector<16x128xf32>
    %37 = arith.addf %35, %36 : vector<16x128xf32>
    %cst_12 = arith.constant 0.000000e+00 : f32
    %38 = vector.broadcast %cst_12 : f32 to vector<16x128xf32>
    %39 = arith.cmpf oge, %37, %38 : vector<16x128xf32>
    %cst_13 = arith.constant 2.000000e-01 : f32
    %40 = vector.broadcast %cst_13 : f32 to vector<16x128xf32>
    %41 = arith.mulf %40, %37 : vector<16x128xf32>
    %42 = arith.select %39, %37, %41 : vector<16x128xi1>, vector<16x128xf32>
    %c0_14 = arith.constant 0 : index
    %c0_15 = arith.constant 0 : index
    %c0_16 = arith.constant 0 : index
    %43 = vector.load %arg3[%c0_14, %c0_15, %c0_16] : memref<5x384x128xf32, #tpu.memory_space<vmem>>, vector<1x384x128xf32>
    %44 = vector.shape_cast %43 : vector<1x384x128xf32> to vector<384x128xf32>
    %c1 = arith.constant 1 : index
    %c0_17 = arith.constant 0 : index
    %45 = vector.load %arg4[%c1, %c0_17] : memref<6x128xf32, #tpu.memory_space<vmem>>, vector<1x128xf32>
    %c1_i32_18 = arith.constant 1 : i32
    %46 = tpu.dynamic_rotate %42 by %c1_i32_18 dim 0 : vector<16x128xf32>, i32 -> vector<16x128xf32>
    %cst_19 = arith.constant 0.000000e+00 : f32
    %47 = vector.shape_cast %19 : vector<16x1xi1> to vector<16x1xi1>
    %48 = vector.broadcast %47 : vector<16x1xi1> to vector<16x128xi1>
    %49 = vector.broadcast %cst_19 : f32 to vector<16x128xf32>
    %50 = arith.select %48, %49, %46 : vector<16x128xi1>, vector<16x128xf32>
    %c15_i32_20 = arith.constant 15 : i32
    %51 = tpu.dynamic_rotate %42 by %c15_i32_20 dim 0 : vector<16x128xf32>, i32 -> vector<16x128xf32>
    %cst_21 = arith.constant 0.000000e+00 : f32
    %52 = vector.shape_cast %21 : vector<16x1xi1> to vector<16x1xi1>
    %53 = vector.broadcast %52 : vector<16x1xi1> to vector<16x128xi1>
    %54 = vector.broadcast %cst_21 : f32 to vector<16x128xf32>
    %55 = arith.select %53, %54, %51 : vector<16x128xi1>, vector<16x128xf32>
    %56 = tpu.concatenate %50, %42, %55 in 1 : vector<16x128xf32>, vector<16x128xf32>, vector<16x128xf32> -> vector<16x384xf32>
    %cst_22 = arith.constant dense<0.000000e+00> : vector<16x128xf32>
    %57 = tpu.matmul %56, %44, %cst_22 {dimension_numbers = #tpu.dot_dimension_numbers<[1], [0], [0], [1], [0, 0, 1, 1], [], []>} : vector<16x384xf32>, vector<384x128xf32>, vector<16x128xf32> -> vector<16x128xf32>
    %58 = vector.broadcast %45 : vector<1x128xf32> to vector<16x128xf32>
    %59 = arith.addf %57, %58 : vector<16x128xf32>
    %cst_23 = arith.constant 0.000000e+00 : f32
    %60 = vector.broadcast %cst_23 : f32 to vector<16x128xf32>
    %61 = arith.cmpf oge, %59, %60 : vector<16x128xf32>
    %cst_24 = arith.constant 2.000000e-01 : f32
    %62 = vector.broadcast %cst_24 : f32 to vector<16x128xf32>
    %63 = arith.mulf %62, %59 : vector<16x128xf32>
    %64 = arith.select %61, %59, %63 : vector<16x128xi1>, vector<16x128xf32>
    %c1_25 = arith.constant 1 : index
    %c0_26 = arith.constant 0 : index
    %c0_27 = arith.constant 0 : index
    %65 = vector.load %arg3[%c1_25, %c0_26, %c0_27] : memref<5x384x128xf32, #tpu.memory_space<vmem>>, vector<1x384x128xf32>
    %66 = vector.shape_cast %65 : vector<1x384x128xf32> to vector<384x128xf32>
    %c2 = arith.constant 2 : index
    %c0_28 = arith.constant 0 : index
    %67 = vector.load %arg4[%c2, %c0_28] : memref<6x128xf32, #tpu.memory_space<vmem>>, vector<1x128xf32>
    %c1_i32_29 = arith.constant 1 : i32
    %68 = tpu.dynamic_rotate %64 by %c1_i32_29 dim 0 : vector<16x128xf32>, i32 -> vector<16x128xf32>
    %cst_30 = arith.constant 0.000000e+00 : f32
    %69 = vector.shape_cast %19 : vector<16x1xi1> to vector<16x1xi1>
    %70 = vector.broadcast %69 : vector<16x1xi1> to vector<16x128xi1>
    %71 = vector.broadcast %cst_30 : f32 to vector<16x128xf32>
    %72 = arith.select %70, %71, %68 : vector<16x128xi1>, vector<16x128xf32>
    %c15_i32_31 = arith.constant 15 : i32
    %73 = tpu.dynamic_rotate %64 by %c15_i32_31 dim 0 : vector<16x128xf32>, i32 -> vector<16x128xf32>
    %cst_32 = arith.constant 0.000000e+00 : f32
    %74 = vector.shape_cast %21 : vector<16x1xi1> to vector<16x1xi1>
    %75 = vector.broadcast %74 : vector<16x1xi1> to vector<16x128xi1>
    %76 = vector.broadcast %cst_32 : f32 to vector<16x128xf32>
    %77 = arith.select %75, %76, %73 : vector<16x128xi1>, vector<16x128xf32>
    %78 = tpu.concatenate %72, %64, %77 in 1 : vector<16x128xf32>, vector<16x128xf32>, vector<16x128xf32> -> vector<16x384xf32>
    %cst_33 = arith.constant dense<0.000000e+00> : vector<16x128xf32>
    %79 = tpu.matmul %78, %66, %cst_33 {dimension_numbers = #tpu.dot_dimension_numbers<[1], [0], [0], [1], [0, 0, 1, 1], [], []>} : vector<16x384xf32>, vector<384x128xf32>, vector<16x128xf32> -> vector<16x128xf32>
    %80 = vector.broadcast %67 : vector<1x128xf32> to vector<16x128xf32>
    %81 = arith.addf %79, %80 : vector<16x128xf32>
    %82 = arith.addf %81, %42 : vector<16x128xf32>
    %c2_34 = arith.constant 2 : index
    %c0_35 = arith.constant 0 : index
    %c0_36 = arith.constant 0 : index
    %83 = vector.load %arg3[%c2_34, %c0_35, %c0_36] : memref<5x384x128xf32, #tpu.memory_space<vmem>>, vector<1x384x128xf32>
    %84 = vector.shape_cast %83 : vector<1x384x128xf32> to vector<384x128xf32>
    %c3 = arith.constant 3 : index
    %c0_37 = arith.constant 0 : index
    %85 = vector.load %arg4[%c3, %c0_37] : memref<6x128xf32, #tpu.memory_space<vmem>>, vector<1x128xf32>
    %c1_i32_38 = arith.constant 1 : i32
    %86 = tpu.dynamic_rotate %82 by %c1_i32_38 dim 0 : vector<16x128xf32>, i32 -> vector<16x128xf32>
    %cst_39 = arith.constant 0.000000e+00 : f32
    %87 = vector.shape_cast %19 : vector<16x1xi1> to vector<16x1xi1>
    %88 = vector.broadcast %87 : vector<16x1xi1> to vector<16x128xi1>
    %89 = vector.broadcast %cst_39 : f32 to vector<16x128xf32>
    %90 = arith.select %88, %89, %86 : vector<16x128xi1>, vector<16x128xf32>
    %c15_i32_40 = arith.constant 15 : i32
    %91 = tpu.dynamic_rotate %82 by %c15_i32_40 dim 0 : vector<16x128xf32>, i32 -> vector<16x128xf32>
    %cst_41 = arith.constant 0.000000e+00 : f32
    %92 = vector.shape_cast %21 : vector<16x1xi1> to vector<16x1xi1>
    %93 = vector.broadcast %92 : vector<16x1xi1> to vector<16x128xi1>
    %94 = vector.broadcast %cst_41 : f32 to vector<16x128xf32>
    %95 = arith.select %93, %94, %91 : vector<16x128xi1>, vector<16x128xf32>
    %96 = tpu.concatenate %90, %82, %95 in 1 : vector<16x128xf32>, vector<16x128xf32>, vector<16x128xf32> -> vector<16x384xf32>
    %cst_42 = arith.constant dense<0.000000e+00> : vector<16x128xf32>
    %97 = tpu.matmul %96, %84, %cst_42 {dimension_numbers = #tpu.dot_dimension_numbers<[1], [0], [0], [1], [0, 0, 1, 1], [], []>} : vector<16x384xf32>, vector<384x128xf32>, vector<16x128xf32> -> vector<16x128xf32>
    %98 = vector.broadcast %85 : vector<1x128xf32> to vector<16x128xf32>
    %99 = arith.addf %97, %98 : vector<16x128xf32>
    %cst_43 = arith.constant 0.000000e+00 : f32
    %100 = vector.broadcast %cst_43 : f32 to vector<16x128xf32>
    %101 = arith.cmpf oge, %99, %100 : vector<16x128xf32>
    %cst_44 = arith.constant 2.000000e-01 : f32
    %102 = vector.broadcast %cst_44 : f32 to vector<16x128xf32>
    %103 = arith.mulf %102, %99 : vector<16x128xf32>
    %104 = arith.select %101, %99, %103 : vector<16x128xi1>, vector<16x128xf32>
    %c3_45 = arith.constant 3 : index
    %c0_46 = arith.constant 0 : index
    %c0_47 = arith.constant 0 : index
    %105 = vector.load %arg3[%c3_45, %c0_46, %c0_47] : memref<5x384x128xf32, #tpu.memory_space<vmem>>, vector<1x384x128xf32>
    %106 = vector.shape_cast %105 : vector<1x384x128xf32> to vector<384x128xf32>
    %c4 = arith.constant 4 : index
    %c0_48 = arith.constant 0 : index
    %107 = vector.load %arg4[%c4, %c0_48] : memref<6x128xf32, #tpu.memory_space<vmem>>, vector<1x128xf32>
    %c1_i32_49 = arith.constant 1 : i32
    %108 = tpu.dynamic_rotate %104 by %c1_i32_49 dim 0 : vector<16x128xf32>, i32 -> vector<16x128xf32>
    %cst_50 = arith.constant 0.000000e+00 : f32
    %109 = vector.shape_cast %19 : vector<16x1xi1> to vector<16x1xi1>
    %110 = vector.broadcast %109 : vector<16x1xi1> to vector<16x128xi1>
    %111 = vector.broadcast %cst_50 : f32 to vector<16x128xf32>
    %112 = arith.select %110, %111, %108 : vector<16x128xi1>, vector<16x128xf32>
    %c15_i32_51 = arith.constant 15 : i32
    %113 = tpu.dynamic_rotate %104 by %c15_i32_51 dim 0 : vector<16x128xf32>, i32 -> vector<16x128xf32>
    %cst_52 = arith.constant 0.000000e+00 : f32
    %114 = vector.shape_cast %21 : vector<16x1xi1> to vector<16x1xi1>
    %115 = vector.broadcast %114 : vector<16x1xi1> to vector<16x128xi1>
    %116 = vector.broadcast %cst_52 : f32 to vector<16x128xf32>
    %117 = arith.select %115, %116, %113 : vector<16x128xi1>, vector<16x128xf32>
    %118 = tpu.concatenate %112, %104, %117 in 1 : vector<16x128xf32>, vector<16x128xf32>, vector<16x128xf32> -> vector<16x384xf32>
    %cst_53 = arith.constant dense<0.000000e+00> : vector<16x128xf32>
    %119 = tpu.matmul %118, %106, %cst_53 {dimension_numbers = #tpu.dot_dimension_numbers<[1], [0], [0], [1], [0, 0, 1, 1], [], []>} : vector<16x384xf32>, vector<384x128xf32>, vector<16x128xf32> -> vector<16x128xf32>
    %120 = vector.broadcast %107 : vector<1x128xf32> to vector<16x128xf32>
    %121 = arith.addf %119, %120 : vector<16x128xf32>
    %cst_54 = arith.constant 0.000000e+00 : f32
    %122 = vector.broadcast %cst_54 : f32 to vector<16x128xf32>
    %123 = arith.cmpf oge, %121, %122 : vector<16x128xf32>
    %cst_55 = arith.constant 2.000000e-01 : f32
    %124 = vector.broadcast %cst_55 : f32 to vector<16x128xf32>
    %125 = arith.mulf %124, %121 : vector<16x128xf32>
    %126 = arith.select %123, %121, %125 : vector<16x128xi1>, vector<16x128xf32>
    %c4_56 = arith.constant 4 : index
    %c0_57 = arith.constant 0 : index
    %c0_58 = arith.constant 0 : index
    %127 = vector.load %arg3[%c4_56, %c0_57, %c0_58] : memref<5x384x128xf32, #tpu.memory_space<vmem>>, vector<1x384x128xf32>
    %128 = vector.shape_cast %127 : vector<1x384x128xf32> to vector<384x128xf32>
    %c5 = arith.constant 5 : index
    %c0_59 = arith.constant 0 : index
    %129 = vector.load %arg4[%c5, %c0_59] : memref<6x128xf32, #tpu.memory_space<vmem>>, vector<1x128xf32>
    %c1_i32_60 = arith.constant 1 : i32
    %130 = tpu.dynamic_rotate %126 by %c1_i32_60 dim 0 : vector<16x128xf32>, i32 -> vector<16x128xf32>
    %cst_61 = arith.constant 0.000000e+00 : f32
    %131 = vector.shape_cast %19 : vector<16x1xi1> to vector<16x1xi1>
    %132 = vector.broadcast %131 : vector<16x1xi1> to vector<16x128xi1>
    %133 = vector.broadcast %cst_61 : f32 to vector<16x128xf32>
    %134 = arith.select %132, %133, %130 : vector<16x128xi1>, vector<16x128xf32>
    %c15_i32_62 = arith.constant 15 : i32
    %135 = tpu.dynamic_rotate %126 by %c15_i32_62 dim 0 : vector<16x128xf32>, i32 -> vector<16x128xf32>
    %cst_63 = arith.constant 0.000000e+00 : f32
    %136 = vector.shape_cast %21 : vector<16x1xi1> to vector<16x1xi1>
    %137 = vector.broadcast %136 : vector<16x1xi1> to vector<16x128xi1>
    %138 = vector.broadcast %cst_63 : f32 to vector<16x128xf32>
    %139 = arith.select %137, %138, %135 : vector<16x128xi1>, vector<16x128xf32>
    %140 = tpu.concatenate %134, %126, %139 in 1 : vector<16x128xf32>, vector<16x128xf32>, vector<16x128xf32> -> vector<16x384xf32>
    %cst_64 = arith.constant dense<0.000000e+00> : vector<16x128xf32>
    %141 = tpu.matmul %140, %128, %cst_64 {dimension_numbers = #tpu.dot_dimension_numbers<[1], [0], [0], [1], [0, 0, 1, 1], [], []>} : vector<16x384xf32>, vector<384x128xf32>, vector<16x128xf32> -> vector<16x128xf32>
    %142 = vector.broadcast %129 : vector<1x128xf32> to vector<16x128xf32>
    %143 = arith.addf %141, %142 : vector<16x128xf32>
    %144 = arith.addf %143, %104 : vector<16x128xf32>
    %c0_65 = arith.constant 0 : index
    %c0_66 = arith.constant 0 : index
    %145 = vector.load %arg5[%c0_65, %c0_66] : memref<16x128xf32, #tpu.memory_space<vmem>>, vector<16x128xf32>
    tpu.vector_store %arg5[%c0_65, %c0_66], %144 {strides = array<i32>} : memref<16x128xf32, #tpu.memory_space<vmem>>, vector<16x128xf32>,
    return
  }
  func.func @transform_0(%arg0: i32) -> (i32, i32) {
    %c0_i32 = arith.constant 0 : i32
    %c0_i32_0 = arith.constant 0 : i32
    return %arg0, %c0_i32 : i32, i32
  }
  func.func @transform_1(%arg0: i32) -> (i32, i32) {
    %c0_i32 = arith.constant 0 : i32
    %c0_i32_0 = arith.constant 0 : i32
    %c0_i32_1 = arith.constant 0 : i32
    return %c0_i32, %c0_i32_0 : i32, i32
  }
  func.func @transform_2(%arg0: i32) -> (i32, i32, i32) {
    %c0_i32 = arith.constant 0 : i32
    %c0_i32_0 = arith.constant 0 : i32
    %c0_i32_1 = arith.constant 0 : i32
    %c0_i32_2 = arith.constant 0 : i32
    return %c0_i32, %c0_i32_0, %c0_i32_1 : i32, i32, i32
  }
  func.func @transform_3(%arg0: i32) -> (i32, i32) {
    %c0_i32 = arith.constant 0 : i32
    %c0_i32_0 = arith.constant 0 : i32
    %c0_i32_1 = arith.constant 0 : i32
    return %c0_i32, %c0_i32_0 : i32, i32
  }
  func.func @transform_4(%arg0: i32) -> (i32, i32) {
    %c0_i32 = arith.constant 0 : i32
    %c0_i32_0 = arith.constant 0 : i32
    return %arg0, %c0_i32 : i32, i32
  }
}

</mosaic_0001>

<llo_original>
// kernel: tpu_custom_call.1
$region0: #{tpu_custom_call.1}
  #allocation0 [shape = 'u32[]', space=smem, size = 0x4, offset = 0x4, fixed_abs, tag = 'smem constant byte address 0x4 - core index']
  #allocation1 [shape = 'u32[144,128]{1,0:T(1,128)}', space=vmem, size = 0x12000, scoped, tag = 'internal scratch']
  %s0 = inlined_call_operand.hbm [shape: f32[16,128], index: 0, kind: input, shape index: {}]
  %s1 = inlined_call_operand.hbm [shape: f32[384,128], index: 1, kind: input, shape index: {}]
  %s2 = inlined_call_operand.hbm [shape: f32[5,384,128], index: 2, kind: input, shape index: {}]
  %s3 = inlined_call_operand.hbm [shape: f32[6,128], index: 3, kind: input, shape index: {}]
  %s4 = inlined_call_operand.hbm [shape: f32[16,128], index: 4, kind: output, shape index: {}]
  %s5 = sld [smem:[#allocation0]]
  $region42: #{tpu_custom_call.1} parent=0
    _
  %s7 = ssub.s32 1, %s5
  %s8 = scalar_select 0, %s7, %s5
  $region1: #{tpu_custom_call.1} parent=0
    #allocation2 [shape = 'u8[8192]{0}', space=vmem, size = 0x2000, scoped, tag = 'input window, operand 0, single buffered']
    #allocation3 [shape = 's32[1]{0}', space=sflag, size = 0x4, scoped, tag = 'scoped memory for tpu_custom_call.1']
    #allocation4 [shape = 's32[1]{0}', space=sflag, size = 0x4, scoped, tag = 'scoped memory for tpu_custom_call.1']
    #allocation5 [shape = 'u8[196608]{0}', space=vmem, size = 0x30000, scoped, tag = 'input window, operand 1, single buffered']
    #allocation6 [shape = 's32[1]{0}', space=sflag, size = 0x4, scoped, tag = 'scoped memory for tpu_custom_call.1']
    #allocation7 [shape = 'u8[983040]{0}', space=vmem, size = 0xf0000, scoped, tag = 'input window, operand 2, single buffered']
    #allocation8 [shape = 'u8[4096]{0}', space=vmem, size = 0x1000, scoped, tag = 'input window, operand 3, single buffered']
    #allocation9 [shape = 's32[1]{0}', space=sflag, size = 0x4, scoped, tag = 'scoped memory for tpu_custom_call.1']
    #allocation10 [shape = 'u8[8192]{0}', space=vmem, size = 0x2000, scoped, tag = 'output window, operand 0, single buffered']
    %9 = vsyncpa [#allocation3], 0
    %10 = vsyncpa [#allocation6], 0
    %11 = vsyncpa [#allocation9], 0
    %12 = vsyncpa [#allocation4], 0
    // Predicated region
    $region2: #{tpu_custom_call.1} parent=1 // pred_check
      _
    $region3: #{tpu_custom_call.1} parent=1 // pred_check_branch
      %14 = sbr.rel (0) target = $region5
    $region4: #{tpu_custom_call.1} parent=1 // pred_region
      %s16 = ssub.s32 256, 256
      %17 = vsyncadd [#allocation3], %s16
      %s18 = sshll.u32 [#allocation2], 4
      %s19 = int_to_ptr.vmem [resolvable:$true] %s18
      %24 = dma.hbm_to_vmem [thread:$0]  %s0, 256, %s19, [#allocation3], 128, 128, 8
    $region5: #{tpu_custom_call.1} parent=1 // pred_fallthru
      _
    // Predicated region
    $region6: #{tpu_custom_call.1} parent=1 // pred_check
      _
    $region7: #{tpu_custom_call.1} parent=1 // pred_check_branch
      %26 = sbr.rel (0) target = $region9
    $region8: #{tpu_custom_call.1} parent=1 // pred_region
      %s28 = ssub.s32 6144, 6144
      %29 = vsyncadd [#allocation6], %s28
      %s30 = sshll.u32 [#allocation5], 4
      %s31 = int_to_ptr.vmem [resolvable:$true] %s30
      %36 = dma.hbm_to_vmem [thread:$0]  %s1, 6144, %s31, [#allocation6], 128, 128, 8
    $region9: #{tpu_custom_call.1} parent=1 // pred_fallthru
      _
    // Predicated region
    $region10: #{tpu_custom_call.1} parent=1 // pred_check
      _
    $region11: #{tpu_custom_call.1} parent=1 // pred_check_branch
      %38 = sbr.rel (0) target = $region13
    $region12: #{tpu_custom_call.1} parent=1 // pred_region
      %s40 = ssub.s32 30720, 30720
      %41 = vsyncadd [#allocation6], %s40
      %s42 = sshll.u32 [#allocation7], 4
      %s43 = int_to_ptr.vmem [resolvable:$true] %s42
      %48 = dma.hbm_to_vmem [thread:$0]  %s2, 30720, %s43, [#allocation6], 128, 128, 8
    $region13: #{tpu_custom_call.1} parent=1 // pred_fallthru
      _
    // Predicated region
    $region14: #{tpu_custom_call.1} parent=1 // pred_check
      _
    $region15: #{tpu_custom_call.1} parent=1 // pred_check_branch
      %50 = sbr.rel (0) target = $region17
    $region16: #{tpu_custom_call.1} parent=1 // pred_region
      %s52 = ssub.s32 128, 128
      %53 = vsyncadd [#allocation9], %s52
      %s55 = sshll.u32 [#allocation8], 4
      %s56 = int_to_ptr.vmem [resolvable:$true] %s55
      %58 = dma.hbm_to_vmem [thread:$0]  %s3, 128, %s56, [#allocation9]
    $region17: #{tpu_custom_call.1} parent=1 // pred_fallthru
      _
    // Predicated region
    $region18: #{tpu_custom_call.1} parent=1 // pred_check
      _
    $region19: #{tpu_custom_call.1} parent=1 // pred_check_branch
      %60 = sbr.rel (0) target = $region21
    $region20: #{tpu_custom_call.1} parent=1 // pred_region
      %61 = dma.done [#allocation3], 256
    $region21: #{tpu_custom_call.1} parent=1 // pred_fallthru
      _
    // Predicated region
    $region22: #{tpu_custom_call.1} parent=1 // pred_check
      _
    $region23: #{tpu_custom_call.1} parent=1 // pred_check_branch
      %63 = sbr.rel (0) target = $region25
    $region24: #{tpu_custom_call.1} parent=1 // pred_region
      %64 = dma.done [#allocation6], 6144
    $region25: #{tpu_custom_call.1} parent=1 // pred_fallthru
      _
    // Predicated region
    $region26: #{tpu_custom_call.1} parent=1 // pred_check
      _
    $region27: #{tpu_custom_call.1} parent=1 // pred_check_branch
      %66 = sbr.rel (0) target = $region29
    $region28: #{tpu_custom_call.1} parent=1 // pred_region
      %67 = dma.done [#allocation6], 30720
    $region29: #{tpu_custom_call.1} parent=1 // pred_fallthru
      _
    // Predicated region
    $region30: #{tpu_custom_call.1} parent=1 // pred_check
      _
    $region31: #{tpu_custom_call.1} parent=1 // pred_check_branch
      %69 = sbr.rel (0) target = $region33
    $region32: #{tpu_custom_call.1} parent=1 // pred_region
      %70 = dma.done [#allocation9], 128
    $region33: #{tpu_custom_call.1} parent=1 // pred_fallthru
      _
    %v71 = vld [vmem:[#allocation2] sm:$0xff]
    %v72 = vld [vmem:[#allocation2 + $0x8] sm:$0xff]
    %v73 = vlaneseq
    %v74 = vshrl.u32 %v73, 7
    %v75 = vadd.s32 %v74, 8
    %vm76 = vcmp.lt.s32.totalorder %v74, 0
    %v77 = vsub.s32 0, %v74
    %v78 = vsel %vm76, %v77, %v74
    %v79 = vshrl.u32 %v78, 3
    %v80 = vand.u32 %v78, 7
    %v81 = vsub.s32 0, %v80
    %v82 = vsel %vm76, %v81, %v80
    %vm83 = vcmp.lt.s32.totalorder %v75, 0
    %v84 = vsub.s32 0, %v75
    %v85 = vsel %vm83, %v84, %v75
    %v86 = vshrl.u32 %v85, 3
    %v87 = vand.u32 %v85, 7
    %v88 = vsub.s32 0, %v87
    %v89 = vsel %vm83, %v88, %v87
    %vm90 = vcmp.ne.s32.totalorder %v82, 0
    %vm91 = vcmp.ne.s32.totalorder %v89, 0
    %vm92 = vcmp.lt.s32.totalorder %v82, 0
    %vm93 = vcmp.lt.s32.totalorder %v89, 0
    %vm94 = vmand %vm92, %vm90
    %vm95 = vmand %vm93, %vm91
    %v96 = vadd.s32 %v82, 8
    %v97 = vadd.s32 %v89, 8
    %v98 = vsel %vm94, %v96, %v82
    %v99 = vsel %vm95, %v97, %v89
    %vm100 = vcmp.eq.s32.totalorder %v98, 0
    %vm101 = vcmp.eq.s32.totalorder %v99, 0
    %vm102 = vcmp.eq.s32.totalorder %v98, 7
    %vm103 = vcmp.eq.s32.totalorder %v99, 7
    %v104 = vld [vmem:[#allocation5] sm:$0xff]
    %v105 = vld [vmem:[#allocation5 + $0x8] sm:$0xff]
    %v106 = vld [vmem:[#allocation5 + $0x10] sm:$0xff]
    %v107 = vld [vmem:[#allocation5 + $0x18] sm:$0xff]
    %v108 = vld [vmem:[#allocation5 + $0x20] sm:$0xff]
    %v109 = vld [vmem:[#allocation5 + $0x28] sm:$0xff]
    %v110 = vld [vmem:[#allocation5 + $0x30] sm:$0xff]
    %v111 = vld [vmem:[#allocation5 + $0x38] sm:$0xff]
    %v112 = vld [vmem:[#allocation5 + $0x40] sm:$0xff]
    %v113 = vld [vmem:[#allocation5 + $0x48] sm:$0xff]
    %v114 = vld [vmem:[#allocation5 + $0x50] sm:$0xff]
    %v115 = vld [vmem:[#allocation5 + $0x58] sm:$0xff]
    %v116 = vld [vmem:[#allocation5 + $0x60] sm:$0xff]
    %v117 = vld [vmem:[#allocation5 + $0x68] sm:$0xff]
    %v118 = vld [vmem:[#allocation5 + $0x70] sm:$0xff]
    %v119 = vld [vmem:[#allocation5 + $0x78] sm:$0xff]
    %v120 = vld [vmem:[#allocation5 + $0x80] sm:$0xff]
    %v121 = vld [vmem:[#allocation5 + $0x88] sm:$0xff]
    %v122 = vld [vmem:[#allocation5 + $0x90] sm:$0xff]
    %v123 = vld [vmem:[#allocation5 + $0x98] sm:$0xff]
    %v124 = vld [vmem:[#allocation5 + $0xa0] sm:$0xff]
    %v125 = vld [vmem:[#allocation5 + $0xa8] sm:$0xff]
    %v126 = vld [vmem:[#allocation5 + $0xb0] sm:$0xff]
    %v127 = vld [vmem:[#allocation5 + $0xb8] sm:$0xff]
    %v128 = vld [vmem:[#allocation5 + $0xc0] sm:$0xff]
    %v129 = vld [vmem:[#allocation5 + $0xc8] sm:$0xff]
    %v130 = vld [vmem:[#allocation5 + $0xd0] sm:$0xff]
    %v131 = vld [vmem:[#allocation5 + $0xd8] sm:$0xff]
    %v132 = vld [vmem:[#allocation5 + $0xe0] sm:$0xff]
    %v133 = vld [vmem:[#allocation5 + $0xe8] sm:$0xff]
    %v134 = vld [vmem:[#allocation5 + $0xf0] sm:$0xff]
    %v135 = vld [vmem:[#allocation5 + $0xf8] sm:$0xff]
    %v136 = vld [vmem:[#allocation5 + $0x100] sm:$0xff]
    %v137 = vld [vmem:[#allocation5 + $0x108] sm:$0xff]
    %v138 = vld [vmem:[#allocation5 + $0x110] sm:$0xff]
    %v139 = vld [vmem:[#allocation5 + $0x118] sm:$0xff]
    %v140 = vld [vmem:[#allocation5 + $0x120] sm:$0xff]
    %v141 = vld [vmem:[#allocation5 + $0x128] sm:$0xff]
    %v142 = vld [vmem:[#allocation5 + $0x130] sm:$0xff]
    %v143 = vld [vmem:[#allocation5 + $0x138] sm:$0xff]
    %v144 = vld [vmem:[#allocation5 + $0x140] sm:$0xff]
    %v145 = vld [vmem:[#allocation5 + $0x148] sm:$0xff]
    %v146 = vld [vmem:[#allocation5 + $0x150] sm:$0xff]
    %v147 = vld [vmem:[#allocation5 + $0x158] sm:$0xff]
    %v148 = vld [vmem:[#allocation5 + $0x160] sm:$0xff]
    %v149 = vld [vmem:[#allocation5 + $0x168] sm:$0xff]
    %v150 = vld [vmem:[#allocation5 + $0x170] sm:$0xff]
    %v151 = vld [vmem:[#allocation5 + $0x178] sm:$0xff]
    %v152 = vld [vmem:[#allocation8] sm:$0x1]
    %v153 = vrot.slane %v71, 7
    %v154 = vrot.slane %v72, 7
    %vm155 = vcmp.lt.s32.totalorder %v74, 1
    %v156 = vsel %vm155, %v153, %v154
    %v157 = vsel %vm155, %v154, %v153
    %v158 = vsel %vm100, 1, 0
    %v159 = vsel %vm101, 1, 0
    %vm160 = vcmp.eq.s32.totalorder %v158, 1
    %vm161 = vcmp.eq.s32.totalorder %v159, 1
    %v162 = vsel %vm160, 0.0, %v157
    %v163 = vsel %vm161, 0.0, %v156
    %v164 = vrot.slane %v71, 1
    %v165 = vrot.slane %v72, 1
    %vm166 = vcmp.lt.s32.totalorder %v74, 7
    %v167 = vsel %vm166, %v164, %v165
    %v168 = vsel %vm166, %v165, %v164
    %v169 = vsel %vm102, 1, 0
    %v170 = vsel %vm103, 1, 0
    %vm171 = vcmp.eq.s32.totalorder %v169, 1
    %vm172 = vcmp.eq.s32.totalorder %v170, 1
    %v173 = vsel %vm171, 0.0, %v167
    %v174 = vsel %vm172, 0.0, %v168
    %v175 = vlaneseq
    %v176 = vshrl.u32 %v175, 7
    %v177 = vsub.s32 0, %v176
    %v178 = vrot.slane %v152, %v177
    %179 = vmatprep.subr.mxu0 0.0
    %180 = vmatpush1.msra.mxu0 %v119
    %181 = vmatprep.subr.mxu0 0.0
    %182 = vmatpush1.msra.mxu0 %v118
    %183 = vmatprep.subr.mxu0 0.0
    %184 = vmatpush1.msra.mxu0 %v117
    %185 = vmatprep.subr.mxu0 0.0
    %186 = vmatpush1.msra.mxu0 %v116
    %187 = vmatprep.subr.mxu0 0.0
    %188 = vmatpush1.msra.mxu0 %v115
    %189 = vmatprep.subr.mxu0 0.0
    %190 = vmatpush1.msra.mxu0 %v114
    %191 = vmatprep.subr.mxu0 0.0
    %192 = vmatpush1.msra.mxu0 %v113
    %193 = vmatprep.subr.mxu0 0.0
    %194 = vmatpush1.msra.mxu0 %v112
    %195 = vmatprep.subr.mxu0 0.0
    %196 = vmatpush1.msra.mxu0 %v111
    %197 = vmatprep.subr.mxu0 0.0
    %198 = vmatpush1.msra.mxu0 %v110
    %199 = vmatprep.subr.mxu0 0.0
    %200 = vmatpush1.msra.mxu0 %v109
    %201 = vmatprep.subr.mxu0 0.0
    %202 = vmatpush1.msra.mxu0 %v108
    %203 = vmatprep.subr.mxu0 0.0
    %204 = vmatpush1.msra.mxu0 %v107
    %205 = vmatprep.subr.mxu0 0.0
    %206 = vmatpush1.msra.mxu0 %v106
    %207 = vmatprep.subr.mxu0 0.0
    %208 = vmatpush1.msra.mxu0 %v105
    %209 = vmatprep.subr.mxu0 0.0
    %210 = vmatpush1.msra.mxu0 %v104
    %211 = vmatprep.subr.mxu0 0.0
    %212 = vmatpush2.msra.mxu0 %v135
    %213 = vmatprep.subr.mxu0 0.0
    %214 = vmatpush2.msra.mxu0 %v134
    %215 = vmatprep.subr.mxu0 0.0
    %216 = vmatpush2.msra.mxu0 %v133
    %217 = vmatprep.subr.mxu0 0.0
    %218 = vmatpush2.msra.mxu0 %v132
    %219 = vmatprep.subr.mxu0 0.0
    %220 = vmatpush2.msra.mxu0 %v131
    %221 = vmatprep.subr.mxu0 0.0
    %222 = vmatpush2.msra.mxu0 %v130
    %223 = vmatprep.subr.mxu0 0.0
    %224 = vmatpush2.msra.mxu0 %v129
    %225 = vmatprep.subr.mxu0 0.0
    %226 = vmatpush2.msra.mxu0 %v128
    %227 = vmatprep.subr.mxu0 0.0
    %228 = vmatpush2.msra.mxu0 %v127
    %229 = vmatprep.subr.mxu0 0.0
    %230 = vmatpush2.msra.mxu0 %v126
    %231 = vmatprep.subr.mxu0 0.0
    %232 = vmatpush2.msra.mxu0 %v125
    %233 = vmatprep.subr.mxu0 0.0
    %234 = vmatpush2.msra.mxu0 %v124
    %235 = vmatprep.subr.mxu0 0.0
    %236 = vmatpush2.msra.mxu0 %v123
    %237 = vmatprep.subr.mxu0 0.0
    %238 = vmatpush2.msra.mxu0 %v122
    %239 = vmatprep.subr.mxu0 0.0
    %240 = vmatpush2.msra.mxu0 %v121
    %241 = vmatprep.subr.mxu0 0.0
    %242 = vmatpush2.msra.mxu0 %v120
    %243 = vmatprep.mubr.f32.mxu0 %v71
    %244 = vmatmul.mubr.f32.gmra.mxu0 %v162
    %v245 = vpop.f32.mrf.mxu0
    %v246 = vadd.f32 %v178, %v245
    %v247 = vpop.f32.mrf.mxu0
    %248 = vmatprep.mubr.f32.mxu0 %v72
    %249 = vmatmul.mubr.f32.gmra.mxu0 %v163
    %v250 = vpop.f32.mrf.mxu0
    %v251 = vadd.f32 %v178, %v250
    %v252 = vpop.f32.mrf.mxu0
    %253 = vdwg.mxu0
    %254 = vmatprep.subr.mxu0 0.0
    %255 = vmatpush1.msra.mxu0 %v151
    %256 = vmatprep.subr.mxu0 0.0
    %257 = vmatpush1.msra.mxu0 %v150
    %258 = vmatprep.subr.mxu0 0.0
    %259 = vmatpush1.msra.mxu0 %v149
    %260 = vmatprep.subr.mxu0 0.0
    %261 = vmatpush1.msra.mxu0 %v148
    %262 = vmatprep.subr.mxu0 0.0
    %263 = vmatpush1.msra.mxu0 %v147
    %264 = vmatprep.subr.mxu0 0.0
    %265 = vmatpush1.msra.mxu0 %v146
    %266 = vmatprep.subr.mxu0 0.0
    %267 = vmatpush1.msra.mxu0 %v145
    %268 = vmatprep.subr.mxu0 0.0
    %269 = vmatpush1.msra.mxu0 %v144
    %270 = vmatprep.subr.mxu0 0.0
    %271 = vmatpush1.msra.mxu0 %v143
    %272 = vmatprep.subr.mxu0 0.0
    %273 = vmatpush1.msra.mxu0 %v142
    %274 = vmatprep.subr.mxu0 0.0
    %275 = vmatpush1.msra.mxu0 %v141
    %276 = vmatprep.subr.mxu0 0.0
    %277 = vmatpush1.msra.mxu0 %v140
    %278 = vmatprep.subr.mxu0 0.0
    %279 = vmatpush1.msra.mxu0 %v139
    %280 = vmatprep.subr.mxu0 0.0
    %281 = vmatpush1.msra.mxu0 %v138
    %282 = vmatprep.subr.mxu0 0.0
    %283 = vmatpush1.msra.mxu0 %v137
    %284 = vmatprep.subr.mxu0 0.0
    %285 = vmatpush1.msra.mxu0 %v136
    %286 = vmatprep.subr.mxu0 0.0
    %287 = vmatpush2.msra.mxu0 0.0
    %288 = vmatprep.subr.mxu0 0.0
    %289 = vmatpush2.msra.mxu0 0.0
    %290 = vmatprep.subr.mxu0 0.0
    %291 = vmatpush2.msra.mxu0 0.0
    %292 = vmatprep.subr.mxu0 0.0
    %293 = vmatpush2.msra.mxu0 0.0
    %294 = vmatprep.subr.mxu0 0.0
    %295 = vmatpush2.msra.mxu0 0.0
    %296 = vmatprep.subr.mxu0 0.0
    %297 = vmatpush2.msra.mxu0 0.0
    %298 = vmatprep.subr.mxu0 0.0
    %299 = vmatpush2.msra.mxu0 0.0
    %300 = vmatprep.subr.mxu0 0.0
    %301 = vmatpush2.msra.mxu0 0.0
    %302 = vmatprep.subr.mxu0 0.0
    %303 = vmatpush2.msra.mxu0 0.0
    %304 = vmatprep.subr.mxu0 0.0
    %305 = vmatpush2.msra.mxu0 0.0
    %306 = vmatprep.subr.mxu0 0.0
    %307 = vmatpush2.msra.mxu0 0.0
    %308 = vmatprep.subr.mxu0 0.0
    %309 = vmatpush2.msra.mxu0 0.0
    %310 = vmatprep.subr.mxu0 0.0
    %311 = vmatpush2.msra.mxu0 0.0
    %312 = vmatprep.subr.mxu0 0.0
    %313 = vmatpush2.msra.mxu0 0.0
    %314 = vmatprep.subr.mxu0 0.0
    %315 = vmatpush2.msra.mxu0 0.0
    %316 = vmatprep.subr.mxu0 0.0
    %317 = vmatpush2.msra.mxu0 0.0
    %318 = vmatprep.mubr.f32.mxu0 0.0
    %319 = vmatmul.mubr.f32.gmra.mxu0 %v173
    %v320 = vpop.f32.mrf.mxu0
    %v321 = vadd.f32 %v246, %v320
    %v322 = vpop.f32.mrf.mxu0
    %323 = vmatprep.mubr.f32.mxu0 0.0
    %324 = vmatmul.mubr.f32.gmra.mxu0 %v174
    %v325 = vpop.f32.mrf.mxu0
    %v326 = vadd.f32 %v251, %v325
    %v327 = vpop.f32.mrf.mxu0
    %328 = vdwg.mxu0
    %vm329 = vcmp.ge.f32.partialorder %v321, 0.0
    %vm330 = vcmp.ge.f32.partialorder %v326, 0.0
    %v331 = vmul.f32 %v321, 0.2
    %v332 = vmul.f32 %v326, 0.2
    %v333 = vsel %vm329, %v321, %v331
    %v334 = vsel %vm330, %v326, %v332
    %v335 = vld [vmem:[#allocation7] sm:$0xff]
    %v336 = vld [vmem:[#allocation7 + $0x8] sm:$0xff]
    %v337 = vld [vmem:[#allocation7 + $0x10] sm:$0xff]
    %v338 = vld [vmem:[#allocation7 + $0x18] sm:$0xff]
    %v339 = vld [vmem:[#allocation7 + $0x20] sm:$0xff]
    %v340 = vld [vmem:[#allocation7 + $0x28] sm:$0xff]
    %v341 = vld [vmem:[#allocation7 + $0x30] sm:$0xff]
    %v342 = vld [vmem:[#allocation7 + $0x38] sm:$0xff]
    %v343 = vld [vmem:[#allocation7 + $0x40] sm:$0xff]
    %v344 = vld [vmem:[#allocation7 + $0x48] sm:$0xff]
    %v345 = vld [vmem:[#allocation7 + $0x50] sm:$0xff]
    %v346 = vld [vmem:[#allocation7 + $0x58] sm:$0xff]
    %v347 = vld [vmem:[#allocation7 + $0x60] sm:$0xff]
    %v348 = vld [vmem:[#allocation7 + $0x68] sm:$0xff]
    %v349 = vld [vmem:[#allocation7 + $0x70] sm:$0xff]
    %v350 = vld [vmem:[#allocation7 + $0x78] sm:$0xff]
    %v351 = vld [vmem:[#allocation7 + $0x80] sm:$0xff]
    %v352 = vld [vmem:[#allocation7 + $0x88] sm:$0xff]
    %v353 = vld [vmem:[#allocation7 + $0x90] sm:$0xff]
    %v354 = vld [vmem:[#allocation7 + $0x98] sm:$0xff]
    %v355 = vld [vmem:[#allocation7 + $0xa0] sm:$0xff]
    %v356 = vld [vmem:[#allocation7 + $0xa8] sm:$0xff]
    %v357 = vld [vmem:[#allocation7 + $0xb0] sm:$0xff]
    %v358 = vld [vmem:[#allocation7 + $0xb8] sm:$0xff]
    %v359 = vld [vmem:[#allocation7 + $0xc0] sm:$0xff]
    %v360 = vld [vmem:[#allocation7 + $0xc8] sm:$0xff]
    %v361 = vld [vmem:[#allocation7 + $0xd0] sm:$0xff]
    %v362 = vld [vmem:[#allocation7 + $0xd8] sm:$0xff]
    %v363 = vld [vmem:[#allocation7 + $0xe0] sm:$0xff]
    %v364 = vld [vmem:[#allocation7 + $0xe8] sm:$0xff]
    %v365 = vld [vmem:[#allocation7 + $0xf0] sm:$0xff]
    %v366 = vld [vmem:[#allocation7 + $0xf8] sm:$0xff]
    %v367 = vld [vmem:[#allocation7 + $0x100] sm:$0xff]
    %v368 = vld [vmem:[#allocation7 + $0x108] sm:$0xff]
    %v369 = vld [vmem:[#allocation7 + $0x110] sm:$0xff]
    %v370 = vld [vmem:[#allocation7 + $0x118] sm:$0xff]
    %v371 = vld [vmem:[#allocation7 + $0x120] sm:$0xff]
    %v372 = vld [vmem:[#allocation7 + $0x128] sm:$0xff]
    %v373 = vld [vmem:[#allocation7 + $0x130] sm:$0xff]
    %v374 = vld [vmem:[#allocation7 + $0x138] sm:$0xff]
    %v375 = vld [vmem:[#allocation7 + $0x140] sm:$0xff]
    %v376 = vld [vmem:[#allocation7 + $0x148] sm:$0xff]
    %v377 = vld [vmem:[#allocation7 + $0x150] sm:$0xff]
    %v378 = vld [vmem:[#allocation7 + $0x158] sm:$0xff]
    %v379 = vld [vmem:[#allocation7 + $0x160] sm:$0xff]
    %v380 = vld [vmem:[#allocation7 + $0x168] sm:$0xff]
    %v381 = vld [vmem:[#allocation7 + $0x170] sm:$0xff]
    %v382 = vld [vmem:[#allocation7 + $0x178] sm:$0xff]
    %v383 = vld [vmem:[#allocation8 + $0x1] sm:$0x1]
    %v384 = vrot.slane %v333, 7
    %v385 = vrot.slane %v334, 7
    %v386 = vsel %vm155, %v384, %v385
    %v387 = vsel %vm155, %v385, %v384
    %v388 = vsel %vm160, 0.0, %v387
    %v389 = vsel %vm161, 0.0, %v386
    %v390 = vrot.slane %v333, 1
    %v391 = vrot.slane %v334, 1
    %v392 = vsel %vm166, %v390, %v391
    %v393 = vsel %vm166, %v391, %v390
    %v394 = vsel %vm171, 0.0, %v392
    %v395 = vsel %vm172, 0.0, %v393
    %v396 = vlaneseq
    %v397 = vshrl.u32 %v396, 7
    %v398 = vsub.s32 0, %v397
    %v399 = vrot.slane %v383, %v398
    %400 = vmatprep.subr.mxu0 0.0
    %401 = vmatpush1.msra.mxu0 %v350
    %402 = vmatprep.subr.mxu0 0.0
    %403 = vmatpush1.msra.mxu0 %v349
    %404 = vmatprep.subr.mxu0 0.0
    %405 = vmatpush1.msra.mxu0 %v348
    %406 = vmatprep.subr.mxu0 0.0
    %407 = vmatpush1.msra.mxu0 %v347
    %408 = vmatprep.subr.mxu0 0.0
    %409 = vmatpush1.msra.mxu0 %v346
    %410 = vmatprep.subr.mxu0 0.0
    %411 = vmatpush1.msra.mxu0 %v345
    %412 = vmatprep.subr.mxu0 0.0
    %413 = vmatpush1.msra.mxu0 %v344
    %414 = vmatprep.subr.mxu0 0.0
    %415 = vmatpush1.msra.mxu0 %v343
    %416 = vmatprep.subr.mxu0 0.0
    %417 = vmatpush1.msra.mxu0 %v342
    %418 = vmatprep.subr.mxu0 0.0
    %419 = vmatpush1.msra.mxu0 %v341
    %420 = vmatprep.subr.mxu0 0.0
    %421 = vmatpush1.msra.mxu0 %v340
    %422 = vmatprep.subr.mxu0 0.0
    %423 = vmatpush1.msra.mxu0 %v339
    %424 = vmatprep.subr.mxu0 0.0
    %425 = vmatpush1.msra.mxu0 %v338
    %426 = vmatprep.subr.mxu0 0.0
    %427 = vmatpush1.msra.mxu0 %v337
    %428 = vmatprep.subr.mxu0 0.0
    %429 = vmatpush1.msra.mxu0 %v336
    %430 = vmatprep.subr.mxu0 0.0
    %431 = vmatpush1.msra.mxu0 %v335
    %432 = vmatprep.subr.mxu0 0.0
    %433 = vmatpush2.msra.mxu0 %v366
    %434 = vmatprep.subr.mxu0 0.0
    %435 = vmatpush2.msra.mxu0 %v365
    %436 = vmatprep.subr.mxu0 0.0
    %437 = vmatpush2.msra.mxu0 %v364
    %438 = vmatprep.subr.mxu0 0.0
    %439 = vmatpush2.msra.mxu0 %v363
    %440 = vmatprep.subr.mxu0 0.0
    %441 = vmatpush2.msra.mxu0 %v362
    %442 = vmatprep.subr.mxu0 0.0
    %443 = vmatpush2.msra.mxu0 %v361
    %444 = vmatprep.subr.mxu0 0.0
    %445 = vmatpush2.msra.mxu0 %v360
    %446 = vmatprep.subr.mxu0 0.0
    %447 = vmatpush2.msra.mxu0 %v359
    %448 = vmatprep.subr.mxu0 0.0
    %449 = vmatpush2.msra.mxu0 %v358
    %450 = vmatprep.subr.mxu0 0.0
    %451 = vmatpush2.msra.mxu0 %v357
    %452 = vmatprep.subr.mxu0 0.0
    %453 = vmatpush2.msra.mxu0 %v356
    %454 = vmatprep.subr.mxu0 0.0
    %455 = vmatpush2.msra.mxu0 %v355
    %456 = vmatprep.subr.mxu0 0.0
    %457 = vmatpush2.msra.mxu0 %v354
    %458 = vmatprep.subr.mxu0 0.0
    %459 = vmatpush2.msra.mxu0 %v353
    %460 = vmatprep.subr.mxu0 0.0
    %461 = vmatpush2.msra.mxu0 %v352
    %462 = vmatprep.subr.mxu0 0.0
    %463 = vmatpush2.msra.mxu0 %v351
    %464 = vmatprep.mubr.f32.mxu0 %v333
    %465 = vmatmul.mubr.f32.gmra.mxu0 %v388
    %v466 = vpop.f32.mrf.mxu0
    %v467 = vadd.f32 %v399, %v466
    %v468 = vpop.f32.mrf.mxu0
    %469 = vmatprep.mubr.f32.mxu0 %v334
    %470 = vmatmul.mubr.f32.gmra.mxu0 %v389
    %v471 = vpop.f32.mrf.mxu0
    %v472 = vadd.f32 %v399, %v471
    %v473 = vpop.f32.mrf.mxu0
    %474 = vdwg.mxu0
    %475 = vmatprep.subr.mxu0 0.0
    %476 = vmatpush1.msra.mxu0 %v382
    %477 = vmatprep.subr.mxu0 0.0
    %478 = vmatpush1.msra.mxu0 %v381
    %479 = vmatprep.subr.mxu0 0.0
    %480 = vmatpush1.msra.mxu0 %v380
    %481 = vmatprep.subr.mxu0 0.0
    %482 = vmatpush1.msra.mxu0 %v379
    %483 = vmatprep.subr.mxu0 0.0
    %484 = vmatpush1.msra.mxu0 %v378
    %485 = vmatprep.subr.mxu0 0.0
    %486 = vmatpush1.msra.mxu0 %v377
    %487 = vmatprep.subr.mxu0 0.0
    %488 = vmatpush1.msra.mxu0 %v376
    %489 = vmatprep.subr.mxu0 0.0
    %490 = vmatpush1.msra.mxu0 %v375
    %491 = vmatprep.subr.mxu0 0.0
    %492 = vmatpush1.msra.mxu0 %v374
    %493 = vmatprep.subr.mxu0 0.0
    %494 = vmatpush1.msra.mxu0 %v373
    %495 = vmatprep.subr.mxu0 0.0
    %496 = vmatpush1.msra.mxu0 %v372
    %497 = vmatprep.subr.mxu0 0.0
    %498 = vmatpush1.msra.mxu0 %v371
    %499 = vmatprep.subr.mxu0 0.0
    %500 = vmatpush1.msra.mxu0 %v370
    %501 = vmatprep.subr.mxu0 0.0
    %502 = vmatpush1.msra.mxu0 %v369
    %503 = vmatprep.subr.mxu0 0.0
    %504 = vmatpush1.msra.mxu0 %v368
    %505 = vmatprep.subr.mxu0 0.0
    %506 = vmatpush1.msra.mxu0 %v367
    %507 = vmatprep.subr.mxu0 0.0
    %508 = vmatpush2.msra.mxu0 0.0
    %509 = vmatprep.subr.mxu0 0.0
    %510 = vmatpush2.msra.mxu0 0.0
    %511 = vmatprep.subr.mxu0 0.0
    %512 = vmatpush2.msra.mxu0 0.0
    %513 = vmatprep.subr.mxu0 0.0
    %514 = vmatpush2.msra.mxu0 0.0
    %515 = vmatprep.subr.mxu0 0.0
    %516 = vmatpush2.msra.mxu0 0.0
    %517 = vmatprep.subr.mxu0 0.0
    %518 = vmatpush2.msra.mxu0 0.0
    %519 = vmatprep.subr.mxu0 0.0
    %520 = vmatpush2.msra.mxu0 0.0
    %521 = vmatprep.subr.mxu0 0.0
    %522 = vmatpush2.msra.mxu0 0.0
    %523 = vmatprep.subr.mxu0 0.0
    %524 = vmatpush2.msra.mxu0 0.0
    %525 = vmatprep.subr.mxu0 0.0
    %526 = vmatpush2.msra.mxu0 0.0
    %527 = vmatprep.subr.mxu0 0.0
    %528 = vmatpush2.msra.mxu0 0.0
    %529 = vmatprep.subr.mxu0 0.0
    %530 = vmatpush2.msra.mxu0 0.0
    %531 = vmatprep.subr.mxu0 0.0
    %532 = vmatpush2.msra.mxu0 0.0
    %533 = vmatprep.subr.mxu0 0.0
    %534 = vmatpush2.msra.mxu0 0.0
    %535 = vmatprep.subr.mxu0 0.0
    %536 = vmatpush2.msra.mxu0 0.0
    %537 = vmatprep.subr.mxu0 0.0
    %538 = vmatpush2.msra.mxu0 0.0
    %539 = vmatprep.mubr.f32.mxu0 0.0
    %540 = vmatmul.mubr.f32.gmra.mxu0 %v394
    %v541 = vpop.f32.mrf.mxu0
    %v542 = vadd.f32 %v467, %v541
    %v543 = vpop.f32.mrf.mxu0
    %544 = vmatprep.mubr.f32.mxu0 0.0
    %545 = vmatmul.mubr.f32.gmra.mxu0 %v395
    %v546 = vpop.f32.mrf.mxu0
    %v547 = vadd.f32 %v472, %v546
    %v548 = vpop.f32.mrf.mxu0
    %549 = vdwg.mxu0
    %vm550 = vcmp.ge.f32.partialorder %v542, 0.0
    %vm551 = vcmp.ge.f32.partialorder %v547, 0.0
    %v552 = vmul.f32 %v542, 0.2
    %v553 = vmul.f32 %v547, 0.2
    %v554 = vsel %vm550, %v542, %v552
    %v555 = vsel %vm551, %v547, %v553
    %s556 = scalar_lea.vmem [#allocation7], 384
    %v557 = vld [vmem:[%s556] sm:$0xff]
    %v558 = vld [vmem:[%s556 + $0x8] sm:$0xff]
    %v559 = vld [vmem:[%s556 + $0x10] sm:$0xff]
    %v560 = vld [vmem:[%s556 + $0x18] sm:$0xff]
    %v561 = vld [vmem:[%s556 + $0x20] sm:$0xff]
    %v562 = vld [vmem:[%s556 + $0x28] sm:$0xff]
    %v563 = vld [vmem:[%s556 + $0x30] sm:$0xff]
    %v564 = vld [vmem:[%s556 + $0x38] sm:$0xff]
    %v565 = vld [vmem:[%s556 + $0x40] sm:$0xff]
    %v566 = vld [vmem:[%s556 + $0x48] sm:$0xff]
    %v567 = vld [vmem:[%s556 + $0x50] sm:$0xff]
    %v568 = vld [vmem:[%s556 + $0x58] sm:$0xff]
    %v569 = vld [vmem:[%s556 + $0x60] sm:$0xff]
    %v570 = vld [vmem:[%s556 + $0x68] sm:$0xff]
    %v571 = vld [vmem:[%s556 + $0x70] sm:$0xff]
    %v572 = vld [vmem:[%s556 + $0x78] sm:$0xff]
    %v573 = vld [vmem:[%s556 + $0x80] sm:$0xff]
    %v574 = vld [vmem:[%s556 + $0x88] sm:$0xff]
    %v575 = vld [vmem:[%s556 + $0x90] sm:$0xff]
    %v576 = vld [vmem:[%s556 + $0x98] sm:$0xff]
    %v577 = vld [vmem:[%s556 + $0xa0] sm:$0xff]
    %v578 = vld [vmem:[%s556 + $0xa8] sm:$0xff]
    %v579 = vld [vmem:[%s556 + $0xb0] sm:$0xff]
    %v580 = vld [vmem:[%s556 + $0xb8] sm:$0xff]
    %v581 = vld [vmem:[%s556 + $0xc0] sm:$0xff]
    %v582 = vld [vmem:[%s556 + $0xc8] sm:$0xff]
    %v583 = vld [vmem:[%s556 + $0xd0] sm:$0xff]
    %v584 = vld [vmem:[%s556 + $0xd8] sm:$0xff]
    %v585 = vld [vmem:[%s556 + $0xe0] sm:$0xff]
    %v586 = vld [vmem:[%s556 + $0xe8] sm:$0xff]
    %v587 = vld [vmem:[%s556 + $0xf0] sm:$0xff]
    %v588 = vld [vmem:[%s556 + $0xf8] sm:$0xff]
    %v589 = vld [vmem:[%s556 + $0x100] sm:$0xff]
    %v590 = vld [vmem:[%s556 + $0x108] sm:$0xff]
    %v591 = vld [vmem:[%s556 + $0x110] sm:$0xff]
    %v592 = vld [vmem:[%s556 + $0x118] sm:$0xff]
    %v593 = vld [vmem:[%s556 + $0x120] sm:$0xff]
    %v594 = vld [vmem:[%s556 + $0x128] sm:$0xff]
    %v595 = vld [vmem:[%s556 + $0x130] sm:$0xff]
    %v596 = vld [vmem:[%s556 + $0x138] sm:$0xff]
    %v597 = vld [vmem:[%s556 + $0x140] sm:$0xff]
    %v598 = vld [vmem:[%s556 + $0x148] sm:$0xff]
    %v599 = vld [vmem:[%s556 + $0x150] sm:$0xff]
    %v600 = vld [vmem:[%s556 + $0x158] sm:$0xff]
    %v601 = vld [vmem:[%s556 + $0x160] sm:$0xff]
    %v602 = vld [vmem:[%s556 + $0x168] sm:$0xff]
    %v603 = vld [vmem:[%s556 + $0x170] sm:$0xff]
    %v604 = vld [vmem:[%s556 + $0x178] sm:$0xff]
    %v605 = vld [vmem:[#allocation8 + $0x2] sm:$0x1]
    %v606 = vrot.slane %v554, 7
    %v607 = vrot.slane %v555, 7
    %v608 = vsel %vm155, %v606, %v607
    %v609 = vsel %vm155, %v607, %v606
    %v610 = vsel %vm160, 0.0, %v609
    %v611 = vsel %vm161, 0.0, %v608
    %v612 = vrot.slane %v554, 1
    %v613 = vrot.slane %v555, 1
    %v614 = vsel %vm166, %v612, %v613
    %v615 = vsel %vm166, %v613, %v612
    %v616 = vsel %vm171, 0.0, %v614
    %v617 = vsel %vm172, 0.0, %v615
    %v618 = vlaneseq
    %v619 = vshrl.u32 %v618, 7
    %v620 = vsub.s32 0, %v619
    %v621 = vrot.slane %v605, %v620
    %622 = vmatprep.subr.mxu0 0.0
    %623 = vmatpush1.msra.mxu0 %v572
    %624 = vmatprep.subr.mxu0 0.0
    %625 = vmatpush1.msra.mxu0 %v571
    %626 = vmatprep.subr.mxu0 0.0
    %627 = vmatpush1.msra.mxu0 %v570
    %628 = vmatprep.subr.mxu0 0.0
    %629 = vmatpush1.msra.mxu0 %v569
    %630 = vmatprep.subr.mxu0 0.0
    %631 = vmatpush1.msra.mxu0 %v568
    %632 = vmatprep.subr.mxu0 0.0
    %633 = vmatpush1.msra.mxu0 %v567
    %634 = vmatprep.subr.mxu0 0.0
    %635 = vmatpush1.msra.mxu0 %v566
    %636 = vmatprep.subr.mxu0 0.0
    %637 = vmatpush1.msra.mxu0 %v565
    %638 = vmatprep.subr.mxu0 0.0
    %639 = vmatpush1.msra.mxu0 %v564
    %640 = vmatprep.subr.mxu0 0.0
    %641 = vmatpush1.msra.mxu0 %v563
    %642 = vmatprep.subr.mxu0 0.0
    %643 = vmatpush1.msra.mxu0 %v562
    %644 = vmatprep.subr.mxu0 0.0
    %645 = vmatpush1.msra.mxu0 %v561
    %646 = vmatprep.subr.mxu0 0.0
    %647 = vmatpush1.msra.mxu0 %v560
    %648 = vmatprep.subr.mxu0 0.0
    %649 = vmatpush1.msra.mxu0 %v559
    %650 = vmatprep.subr.mxu0 0.0
    %651 = vmatpush1.msra.mxu0 %v558
    %652 = vmatprep.subr.mxu0 0.0
    %653 = vmatpush1.msra.mxu0 %v557
    %654 = vmatprep.subr.mxu0 0.0
    %655 = vmatpush2.msra.mxu0 %v588
    %656 = vmatprep.subr.mxu0 0.0
    %657 = vmatpush2.msra.mxu0 %v587
    %658 = vmatprep.subr.mxu0 0.0
    %659 = vmatpush2.msra.mxu0 %v586
    %660 = vmatprep.subr.mxu0 0.0
    %661 = vmatpush2.msra.mxu0 %v585
    %662 = vmatprep.subr.mxu0 0.0
    %663 = vmatpush2.msra.mxu0 %v584
    %664 = vmatprep.subr.mxu0 0.0
    %665 = vmatpush2.msra.mxu0 %v583
    %666 = vmatprep.subr.mxu0 0.0
    %667 = vmatpush2.msra.mxu0 %v582
    %668 = vmatprep.subr.mxu0 0.0
    %669 = vmatpush2.msra.mxu0 %v581
    %670 = vmatprep.subr.mxu0 0.0
    %671 = vmatpush2.msra.mxu0 %v580
    %672 = vmatprep.subr.mxu0 0.0
    %673 = vmatpush2.msra.mxu0 %v579
    %674 = vmatprep.subr.mxu0 0.0
    %675 = vmatpush2.msra.mxu0 %v578
    %676 = vmatprep.subr.mxu0 0.0
    %677 = vmatpush2.msra.mxu0 %v577
    %678 = vmatprep.subr.mxu0 0.0
    %679 = vmatpush2.msra.mxu0 %v576
    %680 = vmatprep.subr.mxu0 0.0
    %681 = vmatpush2.msra.mxu0 %v575
    %682 = vmatprep.subr.mxu0 0.0
    %683 = vmatpush2.msra.mxu0 %v574
    %684 = vmatprep.subr.mxu0 0.0
    %685 = vmatpush2.msra.mxu0 %v573
    %686 = vmatprep.mubr.f32.mxu0 %v554
    %687 = vmatmul.mubr.f32.gmra.mxu0 %v610
    %v688 = vpop.f32.mrf.mxu0
    %v689 = vadd.f32 %v621, %v688
    %v690 = vpop.f32.mrf.mxu0
    %691 = vmatprep.mubr.f32.mxu0 %v555
    %692 = vmatmul.mubr.f32.gmra.mxu0 %v611
    %v693 = vpop.f32.mrf.mxu0
    %v694 = vadd.f32 %v621, %v693
    %v695 = vpop.f32.mrf.mxu0
    %696 = vdwg.mxu0
    %697 = vmatprep.subr.mxu0 0.0
    %698 = vmatpush1.msra.mxu0 %v604
    %699 = vmatprep.subr.mxu0 0.0
    %700 = vmatpush1.msra.mxu0 %v603
    %701 = vmatprep.subr.mxu0 0.0
    %702 = vmatpush1.msra.mxu0 %v602
    %703 = vmatprep.subr.mxu0 0.0
    %704 = vmatpush1.msra.mxu0 %v601
    %705 = vmatprep.subr.mxu0 0.0
    %706 = vmatpush1.msra.mxu0 %v600
    %707 = vmatprep.subr.mxu0 0.0
    %708 = vmatpush1.msra.mxu0 %v599
    %709 = vmatprep.subr.mxu0 0.0
    %710 = vmatpush1.msra.mxu0 %v598
    %711 = vmatprep.subr.mxu0 0.0
    %712 = vmatpush1.msra.mxu0 %v597
    %713 = vmatprep.subr.mxu0 0.0
    %714 = vmatpush1.msra.mxu0 %v596
    %715 = vmatprep.subr.mxu0 0.0
    %716 = vmatpush1.msra.mxu0 %v595
    %717 = vmatprep.subr.mxu0 0.0
    %718 = vmatpush1.msra.mxu0 %v594
    %719 = vmatprep.subr.mxu0 0.0
    %720 = vmatpush1.msra.mxu0 %v593
    %721 = vmatprep.subr.mxu0 0.0
    %722 = vmatpush1.msra.mxu0 %v592
    %723 = vmatprep.subr.mxu0 0.0
    %724 = vmatpush1.msra.mxu0 %v591
    %725 = vmatprep.subr.mxu0 0.0
    %726 = vmatpush1.msra.mxu0 %v590
    %727 = vmatprep.subr.mxu0 0.0
    %728 = vmatpush1.msra.mxu0 %v589
    %729 = vmatprep.subr.mxu0 0.0
    %730 = vmatpush2.msra.mxu0 0.0
    %731 = vmatprep.subr.mxu0 0.0
    %732 = vmatpush2.msra.mxu0 0.0
    %733 = vmatprep.subr.mxu0 0.0
    %734 = vmatpush2.msra.mxu0 0.0
    %735 = vmatprep.subr.mxu0 0.0
    %736 = vmatpush2.msra.mxu0 0.0
    %737 = vmatprep.subr.mxu0 0.0
    %738 = vmatpush2.msra.mxu0 0.0
    %739 = vmatprep.subr.mxu0 0.0
    %740 = vmatpush2.msra.mxu0 0.0
    %741 = vmatprep.subr.mxu0 0.0
    %742 = vmatpush2.msra.mxu0 0.0
    %743 = vmatprep.subr.mxu0 0.0
    %744 = vmatpush2.msra.mxu0 0.0
    %745 = vmatprep.subr.mxu0 0.0
    %746 = vmatpush2.msra.mxu0 0.0
    %747 = vmatprep.subr.mxu0 0.0
    %748 = vmatpush2.msra.mxu0 0.0
    %749 = vmatprep.subr.mxu0 0.0
    %750 = vmatpush2.msra.mxu0 0.0
    %751 = vmatprep.subr.mxu0 0.0
    %752 = vmatpush2.msra.mxu0 0.0
    %753 = vmatprep.subr.mxu0 0.0
    %754 = vmatpush2.msra.mxu0 0.0
    %755 = vmatprep.subr.mxu0 0.0
    %756 = vmatpush2.msra.mxu0 0.0
    %757 = vmatprep.subr.mxu0 0.0
    %758 = vmatpush2.msra.mxu0 0.0
    %759 = vmatprep.subr.mxu0 0.0
    %760 = vmatpush2.msra.mxu0 0.0
    %761 = vmatprep.mubr.f32.mxu0 0.0
    %762 = vmatmul.mubr.f32.gmra.mxu0 %v616
    %v763 = vpop.f32.mrf.mxu0
    %v764 = vadd.f32 %v689, %v763
    %v765 = vpop.f32.mrf.mxu0
    %766 = vmatprep.mubr.f32.mxu0 0.0
    %767 = vmatmul.mubr.f32.gmra.mxu0 %v617
    %v768 = vpop.f32.mrf.mxu0
    %v769 = vadd.f32 %v694, %v768
    %v770 = vpop.f32.mrf.mxu0
    %771 = vdwg.mxu0
    %v772 = vadd.f32 %v764, %v333
    %v773 = vadd.f32 %v769, %v334
    %s774 = scalar_lea.vmem [#allocation7], 768
    %v775 = vld [vmem:[%s774] sm:$0xff]
    %v776 = vld [vmem:[%s774 + $0x8] sm:$0xff]
    %v777 = vld [vmem:[%s774 + $0x10] sm:$0xff]
    %v778 = vld [vmem:[%s774 + $0x18] sm:$0xff]
    %v779 = vld [vmem:[%s774 + $0x20] sm:$0xff]
    %v780 = vld [vmem:[%s774 + $0x28] sm:$0xff]
    %v781 = vld [vmem:[%s774 + $0x30] sm:$0xff]
    %v782 = vld [vmem:[%s774 + $0x38] sm:$0xff]
    %v783 = vld [vmem:[%s774 + $0x40] sm:$0xff]
    %v784 = vld [vmem:[%s774 + $0x48] sm:$0xff]
    %v785 = vld [vmem:[%s774 + $0x50] sm:$0xff]
    %v786 = vld [vmem:[%s774 + $0x58] sm:$0xff]
    %v787 = vld [vmem:[%s774 + $0x60] sm:$0xff]
    %v788 = vld [vmem:[%s774 + $0x68] sm:$0xff]
    %v789 = vld [vmem:[%s774 + $0x70] sm:$0xff]
    %v790 = vld [vmem:[%s774 + $0x78] sm:$0xff]
    %v791 = vld [vmem:[%s774 + $0x80] sm:$0xff]
    %v792 = vld [vmem:[%s774 + $0x88] sm:$0xff]
    %v793 = vld [vmem:[%s774 + $0x90] sm:$0xff]
    %v794 = vld [vmem:[%s774 + $0x98] sm:$0xff]
    %v795 = vld [vmem:[%s774 + $0xa0] sm:$0xff]
    %v796 = vld [vmem:[%s774 + $0xa8] sm:$0xff]
    %v797 = vld [vmem:[%s774 + $0xb0] sm:$0xff]
    %v798 = vld [vmem:[%s774 + $0xb8] sm:$0xff]
    %v799 = vld [vmem:[%s774 + $0xc0] sm:$0xff]
    %v800 = vld [vmem:[%s774 + $0xc8] sm:$0xff]
    %v801 = vld [vmem:[%s774 + $0xd0] sm:$0xff]
    %v802 = vld [vmem:[%s774 + $0xd8] sm:$0xff]
    %v803 = vld [vmem:[%s774 + $0xe0] sm:$0xff]
    %v804 = vld [vmem:[%s774 + $0xe8] sm:$0xff]
    %v805 = vld [vmem:[%s774 + $0xf0] sm:$0xff]
    %v806 = vld [vmem:[%s774 + $0xf8] sm:$0xff]
    %v807 = vld [vmem:[%s774 + $0x100] sm:$0xff]
    %v808 = vld [vmem:[%s774 + $0x108] sm:$0xff]
    %v809 = vld [vmem:[%s774 + $0x110] sm:$0xff]
    %v810 = vld [vmem:[%s774 + $0x118] sm:$0xff]
    %v811 = vld [vmem:[%s774 + $0x120] sm:$0xff]
    %v812 = vld [vmem:[%s774 + $0x128] sm:$0xff]
    %v813 = vld [vmem:[%s774 + $0x130] sm:$0xff]
    %v814 = vld [vmem:[%s774 + $0x138] sm:$0xff]
    %v815 = vld [vmem:[%s774 + $0x140] sm:$0xff]
    %v816 = vld [vmem:[%s774 + $0x148] sm:$0xff]
    %v817 = vld [vmem:[%s774 + $0x150] sm:$0xff]
    %v818 = vld [vmem:[%s774 + $0x158] sm:$0xff]
    %v819 = vld [vmem:[%s774 + $0x160] sm:$0xff]
    %v820 = vld [vmem:[%s774 + $0x168] sm:$0xff]
    %v821 = vld [vmem:[%s774 + $0x170] sm:$0xff]
    %v822 = vld [vmem:[%s774 + $0x178] sm:$0xff]
    %v823 = vld [vmem:[#allocation8 + $0x3] sm:$0x1]
    %v824 = vrot.slane %v772, 7
    %v825 = vrot.slane %v773, 7
    %v826 = vsel %vm155, %v824, %v825
    %v827 = vsel %vm155, %v825, %v824
    %v828 = vsel %vm160, 0.0, %v827
    %v829 = vsel %vm161, 0.0, %v826
    %v830 = vrot.slane %v772, 1
    %v831 = vrot.slane %v773, 1
    %v832 = vsel %vm166, %v830, %v831
    %v833 = vsel %vm166, %v831, %v830
    %v834 = vsel %vm171, 0.0, %v832
    %v835 = vsel %vm172, 0.0, %v833
    %v836 = vlaneseq
    %v837 = vshrl.u32 %v836, 7
    %v838 = vsub.s32 0, %v837
    %v839 = vrot.slane %v823, %v838
    %840 = vmatprep.subr.mxu0 0.0
    %841 = vmatpush1.msra.mxu0 %v790
    %842 = vmatprep.subr.mxu0 0.0
    %843 = vmatpush1.msra.mxu0 %v789
    %844 = vmatprep.subr.mxu0 0.0
    %845 = vmatpush1.msra.mxu0 %v788
    %846 = vmatprep.subr.mxu0 0.0
    %847 = vmatpush1.msra.mxu0 %v787
    %848 = vmatprep.subr.mxu0 0.0
    %849 = vmatpush1.msra.mxu0 %v786
    %850 = vmatprep.subr.mxu0 0.0
    %851 = vmatpush1.msra.mxu0 %v785
    %852 = vmatprep.subr.mxu0 0.0
    %853 = vmatpush1.msra.mxu0 %v784
    %854 = vmatprep.subr.mxu0 0.0
    %855 = vmatpush1.msra.mxu0 %v783
    %856 = vmatprep.subr.mxu0 0.0
    %857 = vmatpush1.msra.mxu0 %v782
    %858 = vmatprep.subr.mxu0 0.0
    %859 = vmatpush1.msra.mxu0 %v781
    %860 = vmatprep.subr.mxu0 0.0
    %861 = vmatpush1.msra.mxu0 %v780
    %862 = vmatprep.subr.mxu0 0.0
    %863 = vmatpush1.msra.mxu0 %v779
    %864 = vmatprep.subr.mxu0 0.0
    %865 = vmatpush1.msra.mxu0 %v778
    %866 = vmatprep.subr.mxu0 0.0
    %867 = vmatpush1.msra.mxu0 %v777
    %868 = vmatprep.subr.mxu0 0.0
    %869 = vmatpush1.msra.mxu0 %v776
    %870 = vmatprep.subr.mxu0 0.0
    %871 = vmatpush1.msra.mxu0 %v775
    %872 = vmatprep.subr.mxu0 0.0
    %873 = vmatpush2.msra.mxu0 %v806
    %874 = vmatprep.subr.mxu0 0.0
    %875 = vmatpush2.msra.mxu0 %v805
    %876 = vmatprep.subr.mxu0 0.0
    %877 = vmatpush2.msra.mxu0 %v804
    %878 = vmatprep.subr.mxu0 0.0
    %879 = vmatpush2.msra.mxu0 %v803
    %880 = vmatprep.subr.mxu0 0.0
    %881 = vmatpush2.msra.mxu0 %v802
    %882 = vmatprep.subr.mxu0 0.0
    %883 = vmatpush2.msra.mxu0 %v801
    %884 = vmatprep.subr.mxu0 0.0
    %885 = vmatpush2.msra.mxu0 %v800
    %886 = vmatprep.subr.mxu0 0.0
    %887 = vmatpush2.msra.mxu0 %v799
    %888 = vmatprep.subr.mxu0 0.0
    %889 = vmatpush2.msra.mxu0 %v798
    %890 = vmatprep.subr.mxu0 0.0
    %891 = vmatpush2.msra.mxu0 %v797
    %892 = vmatprep.subr.mxu0 0.0
    %893 = vmatpush2.msra.mxu0 %v796
    %894 = vmatprep.subr.mxu0 0.0
    %895 = vmatpush2.msra.mxu0 %v795
    %896 = vmatprep.subr.mxu0 0.0
    %897 = vmatpush2.msra.mxu0 %v794
    %898 = vmatprep.subr.mxu0 0.0
    %899 = vmatpush2.msra.mxu0 %v793
    %900 = vmatprep.subr.mxu0 0.0
    %901 = vmatpush2.msra.mxu0 %v792
    %902 = vmatprep.subr.mxu0 0.0
    %903 = vmatpush2.msra.mxu0 %v791
    %904 = vmatprep.mubr.f32.mxu0 %v772
    %905 = vmatmul.mubr.f32.gmra.mxu0 %v828
    %v906 = vpop.f32.mrf.mxu0
    %v907 = vadd.f32 %v839, %v906
    %v908 = vpop.f32.mrf.mxu0
    %909 = vmatprep.mubr.f32.mxu0 %v773
    %910 = vmatmul.mubr.f32.gmra.mxu0 %v829
    %v911 = vpop.f32.mrf.mxu0
    %v912 = vadd.f32 %v839, %v911
    %v913 = vpop.f32.mrf.mxu0
    %914 = vdwg.mxu0
    %915 = vmatprep.subr.mxu0 0.0
    %916 = vmatpush1.msra.mxu0 %v822
    %917 = vmatprep.subr.mxu0 0.0
    %918 = vmatpush1.msra.mxu0 %v821
    %919 = vmatprep.subr.mxu0 0.0
    %920 = vmatpush1.msra.mxu0 %v820
    %921 = vmatprep.subr.mxu0 0.0
    %922 = vmatpush1.msra.mxu0 %v819
    %923 = vmatprep.subr.mxu0 0.0
    %924 = vmatpush1.msra.mxu0 %v818
    %925 = vmatprep.subr.mxu0 0.0
    %926 = vmatpush1.msra.mxu0 %v817
    %927 = vmatprep.subr.mxu0 0.0
    %928 = vmatpush1.msra.mxu0 %v816
    %929 = vmatprep.subr.mxu0 0.0
    %930 = vmatpush1.msra.mxu0 %v815
    %931 = vmatprep.subr.mxu0 0.0
    %932 = vmatpush1.msra.mxu0 %v814
    %933 = vmatprep.subr.mxu0 0.0
    %934 = vmatpush1.msra.mxu0 %v813
    %935 = vmatprep.subr.mxu0 0.0
    %936 = vmatpush1.msra.mxu0 %v812
    %937 = vmatprep.subr.mxu0 0.0
    %938 = vmatpush1.msra.mxu0 %v811
    %939 = vmatprep.subr.mxu0 0.0
    %940 = vmatpush1.msra.mxu0 %v810
    %941 = vmatprep.subr.mxu0 0.0
    %942 = vmatpush1.msra.mxu0 %v809
    %943 = vmatprep.subr.mxu0 0.0
    %944 = vmatpush1.msra.mxu0 %v808
    %945 = vmatprep.subr.mxu0 0.0
    %946 = vmatpush1.msra.mxu0 %v807
    %947 = vmatprep.subr.mxu0 0.0
    %948 = vmatpush2.msra.mxu0 0.0
    %949 = vmatprep.subr.mxu0 0.0
    %950 = vmatpush2.msra.mxu0 0.0
    %951 = vmatprep.subr.mxu0 0.0
    %952 = vmatpush2.msra.mxu0 0.0
    %953 = vmatprep.subr.mxu0 0.0
    %954 = vmatpush2.msra.mxu0 0.0
    %955 = vmatprep.subr.mxu0 0.0
    %956 = vmatpush2.msra.mxu0 0.0
    %957 = vmatprep.subr.mxu0 0.0
    %958 = vmatpush2.msra.mxu0 0.0
    %959 = vmatprep.subr.mxu0 0.0
    %960 = vmatpush2.msra.mxu0 0.0
    %961 = vmatprep.subr.mxu0 0.0
    %962 = vmatpush2.msra.mxu0 0.0
    %963 = vmatprep.subr.mxu0 0.0
    %964 = vmatpush2.msra.mxu0 0.0
    %965 = vmatprep.subr.mxu0 0.0
    %966 = vmatpush2.msra.mxu0 0.0
    %967 = vmatprep.subr.mxu0 0.0
    %968 = vmatpush2.msra.mxu0 0.0
    %969 = vmatprep.subr.mxu0 0.0
    %970 = vmatpush2.msra.mxu0 0.0
    %971 = vmatprep.subr.mxu0 0.0
    %972 = vmatpush2.msra.mxu0 0.0
    %973 = vmatprep.subr.mxu0 0.0
    %974 = vmatpush2.msra.mxu0 0.0
    %975 = vmatprep.subr.mxu0 0.0
    %976 = vmatpush2.msra.mxu0 0.0
    %977 = vmatprep.subr.mxu0 0.0
    %978 = vmatpush2.msra.mxu0 0.0
    %979 = vmatprep.mubr.f32.mxu0 0.0
    %980 = vmatmul.mubr.f32.gmra.mxu0 %v834
    %v981 = vpop.f32.mrf.mxu0
    %v982 = vadd.f32 %v907, %v981
    %v983 = vpop.f32.mrf.mxu0
    %984 = vmatprep.mubr.f32.mxu0 0.0
    %985 = vmatmul.mubr.f32.gmra.mxu0 %v835
    %v986 = vpop.f32.mrf.mxu0
    %v987 = vadd.f32 %v912, %v986
    %v988 = vpop.f32.mrf.mxu0
    %989 = vdwg.mxu0
    %vm990 = vcmp.ge.f32.partialorder %v982, 0.0
    %vm991 = vcmp.ge.f32.partialorder %v987, 0.0
    %v992 = vmul.f32 %v982, 0.2
    %v993 = vmul.f32 %v987, 0.2
    %v994 = vsel %vm990, %v982, %v992
    %v995 = vsel %vm991, %v987, %v993
    %s996 = scalar_lea.vmem [#allocation7], 1152
    %v997 = vld [vmem:[%s996] sm:$0xff]
    %v998 = vld [vmem:[%s996 + $0x8] sm:$0xff]
    %v999 = vld [vmem:[%s996 + $0x10] sm:$0xff]
    %v1000 = vld [vmem:[%s996 + $0x18] sm:$0xff]
    %v1001 = vld [vmem:[%s996 + $0x20] sm:$0xff]
    %v1002 = vld [vmem:[%s996 + $0x28] sm:$0xff]
    %v1003 = vld [vmem:[%s996 + $0x30] sm:$0xff]
    %v1004 = vld [vmem:[%s996 + $0x38] sm:$0xff]
    %v1005 = vld [vmem:[%s996 + $0x40] sm:$0xff]
    %v1006 = vld [vmem:[%s996 + $0x48] sm:$0xff]
    %v1007 = vld [vmem:[%s996 + $0x50] sm:$0xff]
    %v1008 = vld [vmem:[%s996 + $0x58] sm:$0xff]
    %v1009 = vld [vmem:[%s996 + $0x60] sm:$0xff]
    %v1010 = vld [vmem:[%s996 + $0x68] sm:$0xff]
    %v1011 = vld [vmem:[%s996 + $0x70] sm:$0xff]
    %v1012 = vld [vmem:[%s996 + $0x78] sm:$0xff]
    %v1013 = vld [vmem:[%s996 + $0x80] sm:$0xff]
    %v1014 = vld [vmem:[%s996 + $0x88] sm:$0xff]
    %v1015 = vld [vmem:[%s996 + $0x90] sm:$0xff]
    %v1016 = vld [vmem:[%s996 + $0x98] sm:$0xff]
    %v1017 = vld [vmem:[%s996 + $0xa0] sm:$0xff]
    %v1018 = vld [vmem:[%s996 + $0xa8] sm:$0xff]
    %v1019 = vld [vmem:[%s996 + $0xb0] sm:$0xff]
    %v1020 = vld [vmem:[%s996 + $0xb8] sm:$0xff]
    %v1021 = vld [vmem:[%s996 + $0xc0] sm:$0xff]
    %v1022 = vld [vmem:[%s996 + $0xc8] sm:$0xff]
    %v1023 = vld [vmem:[%s996 + $0xd0] sm:$0xff]
    %v1024 = vld [vmem:[%s996 + $0xd8] sm:$0xff]
    %v1025 = vld [vmem:[%s996 + $0xe0] sm:$0xff]
    %v1026 = vld [vmem:[%s996 + $0xe8] sm:$0xff]
    %v1027 = vld [vmem:[%s996 + $0xf0] sm:$0xff]
    %v1028 = vld [vmem:[%s996 + $0xf8] sm:$0xff]
    %v1029 = vld [vmem:[%s996 + $0x100] sm:$0xff]
    %v1030 = vld [vmem:[%s996 + $0x108] sm:$0xff]
    %v1031 = vld [vmem:[%s996 + $0x110] sm:$0xff]
    %v1032 = vld [vmem:[%s996 + $0x118] sm:$0xff]
    %v1033 = vld [vmem:[%s996 + $0x120] sm:$0xff]
    %v1034 = vld [vmem:[%s996 + $0x128] sm:$0xff]
    %v1035 = vld [vmem:[%s996 + $0x130] sm:$0xff]
    %v1036 = vld [vmem:[%s996 + $0x138] sm:$0xff]
    %v1037 = vld [vmem:[%s996 + $0x140] sm:$0xff]
    %v1038 = vld [vmem:[%s996 + $0x148] sm:$0xff]
    %v1039 = vld [vmem:[%s996 + $0x150] sm:$0xff]
    %v1040 = vld [vmem:[%s996 + $0x158] sm:$0xff]
    %v1041 = vld [vmem:[%s996 + $0x160] sm:$0xff]
    %v1042 = vld [vmem:[%s996 + $0x168] sm:$0xff]
    %v1043 = vld [vmem:[%s996 + $0x170] sm:$0xff]
    %v1044 = vld [vmem:[%s996 + $0x178] sm:$0xff]
    %v1045 = vld [vmem:[#allocation8 + $0x4] sm:$0x1]
    %v1046 = vrot.slane %v994, 7
    %v1047 = vrot.slane %v995, 7
    %v1048 = vsel %vm155, %v1046, %v1047
    %v1049 = vsel %vm155, %v1047, %v1046
    %v1050 = vsel %vm160, 0.0, %v1049
    %v1051 = vsel %vm161, 0.0, %v1048
    %v1052 = vrot.slane %v994, 1
    %v1053 = vrot.slane %v995, 1
    %v1054 = vsel %vm166, %v1052, %v1053
    %v1055 = vsel %vm166, %v1053, %v1052
    %v1056 = vsel %vm171, 0.0, %v1054
    %v1057 = vsel %vm172, 0.0, %v1055
    %v1058 = vlaneseq
    %v1059 = vshrl.u32 %v1058, 7
    %v1060 = vsub.s32 0, %v1059
    %v1061 = vrot.slane %v1045, %v1060
    %1062 = vmatprep.subr.mxu0 0.0
    %1063 = vmatpush1.msra.mxu0 %v1012
    %1064 = vmatprep.subr.mxu0 0.0
    %1065 = vmatpush1.msra.mxu0 %v1011
    %1066 = vmatprep.subr.mxu0 0.0
    %1067 = vmatpush1.msra.mxu0 %v1010
    %1068 = vmatprep.subr.mxu0 0.0
    %1069 = vmatpush1.msra.mxu0 %v1009
    %1070 = vmatprep.subr.mxu0 0.0
    %1071 = vmatpush1.msra.mxu0 %v1008
    %1072 = vmatprep.subr.mxu0 0.0
    %1073 = vmatpush1.msra.mxu0 %v1007
    %1074 = vmatprep.subr.mxu0 0.0
    %1075 = vmatpush1.msra.mxu0 %v1006
    %1076 = vmatprep.subr.mxu0 0.0
    %1077 = vmatpush1.msra.mxu0 %v1005
    %1078 = vmatprep.subr.mxu0 0.0
    %1079 = vmatpush1.msra.mxu0 %v1004
    %1080 = vmatprep.subr.mxu0 0.0
    %1081 = vmatpush1.msra.mxu0 %v1003
    %1082 = vmatprep.subr.mxu0 0.0
    %1083 = vmatpush1.msra.mxu0 %v1002
    %1084 = vmatprep.subr.mxu0 0.0
    %1085 = vmatpush1.msra.mxu0 %v1001
    %1086 = vmatprep.subr.mxu0 0.0
    %1087 = vmatpush1.msra.mxu0 %v1000
    %1088 = vmatprep.subr.mxu0 0.0
    %1089 = vmatpush1.msra.mxu0 %v999
    %1090 = vmatprep.subr.mxu0 0.0
    %1091 = vmatpush1.msra.mxu0 %v998
    %1092 = vmatprep.subr.mxu0 0.0
    %1093 = vmatpush1.msra.mxu0 %v997
    %1094 = vmatprep.subr.mxu0 0.0
    %1095 = vmatpush2.msra.mxu0 %v1028
    %1096 = vmatprep.subr.mxu0 0.0
    %1097 = vmatpush2.msra.mxu0 %v1027
    %1098 = vmatprep.subr.mxu0 0.0
    %1099 = vmatpush2.msra.mxu0 %v1026
    %1100 = vmatprep.subr.mxu0 0.0
    %1101 = vmatpush2.msra.mxu0 %v1025
    %1102 = vmatprep.subr.mxu0 0.0
    %1103 = vmatpush2.msra.mxu0 %v1024
    %1104 = vmatprep.subr.mxu0 0.0
    %1105 = vmatpush2.msra.mxu0 %v1023
    %1106 = vmatprep.subr.mxu0 0.0
    %1107 = vmatpush2.msra.mxu0 %v1022
    %1108 = vmatprep.subr.mxu0 0.0
    %1109 = vmatpush2.msra.mxu0 %v1021
    %1110 = vmatprep.subr.mxu0 0.0
    %1111 = vmatpush2.msra.mxu0 %v1020
    %1112 = vmatprep.subr.mxu0 0.0
    %1113 = vmatpush2.msra.mxu0 %v1019
    %1114 = vmatprep.subr.mxu0 0.0
    %1115 = vmatpush2.msra.mxu0 %v1018
    %1116 = vmatprep.subr.mxu0 0.0
    %1117 = vmatpush2.msra.mxu0 %v1017
    %1118 = vmatprep.subr.mxu0 0.0
    %1119 = vmatpush2.msra.mxu0 %v1016
    %1120 = vmatprep.subr.mxu0 0.0
    %1121 = vmatpush2.msra.mxu0 %v1015
    %1122 = vmatprep.subr.mxu0 0.0
    %1123 = vmatpush2.msra.mxu0 %v1014
    %1124 = vmatprep.subr.mxu0 0.0
    %1125 = vmatpush2.msra.mxu0 %v1013
    %1126 = vmatprep.mubr.f32.mxu0 %v994
    %1127 = vmatmul.mubr.f32.gmra.mxu0 %v1050
    %v1128 = vpop.f32.mrf.mxu0
    %v1129 = vadd.f32 %v1061, %v1128
    %v1130 = vpop.f32.mrf.mxu0
    %1131 = vmatprep.mubr.f32.mxu0 %v995
    %1132 = vmatmul.mubr.f32.gmra.mxu0 %v1051
    %v1133 = vpop.f32.mrf.mxu0
    %v1134 = vadd.f32 %v1061, %v1133
    %v1135 = vpop.f32.mrf.mxu0
    %1136 = vdwg.mxu0
    %1137 = vmatprep.subr.mxu0 0.0
    %1138 = vmatpush1.msra.mxu0 %v1044
    %1139 = vmatprep.subr.mxu0 0.0
    %1140 = vmatpush1.msra.mxu0 %v1043
    %1141 = vmatprep.subr.mxu0 0.0
    %1142 = vmatpush1.msra.mxu0 %v1042
    %1143 = vmatprep.subr.mxu0 0.0
    %1144 = vmatpush1.msra.mxu0 %v1041
    %1145 = vmatprep.subr.mxu0 0.0
    %1146 = vmatpush1.msra.mxu0 %v1040
    %1147 = vmatprep.subr.mxu0 0.0
    %1148 = vmatpush1.msra.mxu0 %v1039
    %1149 = vmatprep.subr.mxu0 0.0
    %1150 = vmatpush1.msra.mxu0 %v1038
    %1151 = vmatprep.subr.mxu0 0.0
    %1152 = vmatpush1.msra.mxu0 %v1037
    %1153 = vmatprep.subr.mxu0 0.0
    %1154 = vmatpush1.msra.mxu0 %v1036
    %1155 = vmatprep.subr.mxu0 0.0
    %1156 = vmatpush1.msra.mxu0 %v1035
    %1157 = vmatprep.subr.mxu0 0.0
    %1158 = vmatpush1.msra.mxu0 %v1034
    %1159 = vmatprep.subr.mxu0 0.0
    %1160 = vmatpush1.msra.mxu0 %v1033
    %1161 = vmatprep.subr.mxu0 0.0
    %1162 = vmatpush1.msra.mxu0 %v1032
    %1163 = vmatprep.subr.mxu0 0.0
    %1164 = vmatpush1.msra.mxu0 %v1031
    %1165 = vmatprep.subr.mxu0 0.0
    %1166 = vmatpush1.msra.mxu0 %v1030
    %1167 = vmatprep.subr.mxu0 0.0
    %1168 = vmatpush1.msra.mxu0 %v1029
    %1169 = vmatprep.subr.mxu0 0.0
    %1170 = vmatpush2.msra.mxu0 0.0
    %1171 = vmatprep.subr.mxu0 0.0
    %1172 = vmatpush2.msra.mxu0 0.0
    %1173 = vmatprep.subr.mxu0 0.0
    %1174 = vmatpush2.msra.mxu0 0.0
    %1175 = vmatprep.subr.mxu0 0.0
    %1176 = vmatpush2.msra.mxu0 0.0
    %1177 = vmatprep.subr.mxu0 0.0
    %1178 = vmatpush2.msra.mxu0 0.0
    %1179 = vmatprep.subr.mxu0 0.0
    %1180 = vmatpush2.msra.mxu0 0.0
    %1181 = vmatprep.subr.mxu0 0.0
    %1182 = vmatpush2.msra.mxu0 0.0
    %1183 = vmatprep.subr.mxu0 0.0
    %1184 = vmatpush2.msra.mxu0 0.0
    %1185 = vmatprep.subr.mxu0 0.0
    %1186 = vmatpush2.msra.mxu0 0.0
    %1187 = vmatprep.subr.mxu0 0.0
    %1188 = vmatpush2.msra.mxu0 0.0
    %1189 = vmatprep.subr.mxu0 0.0
    %1190 = vmatpush2.msra.mxu0 0.0
    %1191 = vmatprep.subr.mxu0 0.0
    %1192 = vmatpush2.msra.mxu0 0.0
    %1193 = vmatprep.subr.mxu0 0.0
    %1194 = vmatpush2.msra.mxu0 0.0
    %1195 = vmatprep.subr.mxu0 0.0
    %1196 = vmatpush2.msra.mxu0 0.0
    %1197 = vmatprep.subr.mxu0 0.0
    %1198 = vmatpush2.msra.mxu0 0.0
    %1199 = vmatprep.subr.mxu0 0.0
    %1200 = vmatpush2.msra.mxu0 0.0
    %1201 = vmatprep.mubr.f32.mxu0 0.0
    %1202 = vmatmul.mubr.f32.gmra.mxu0 %v1056
    %v1203 = vpop.f32.mrf.mxu0
    %v1204 = vadd.f32 %v1129, %v1203
    %v1205 = vpop.f32.mrf.mxu0
    %1206 = vmatprep.mubr.f32.mxu0 0.0
    %1207 = vmatmul.mubr.f32.gmra.mxu0 %v1057
    %v1208 = vpop.f32.mrf.mxu0
    %v1209 = vadd.f32 %v1134, %v1208
    %v1210 = vpop.f32.mrf.mxu0
    %1211 = vdwg.mxu0
    %vm1212 = vcmp.ge.f32.partialorder %v1204, 0.0
    %vm1213 = vcmp.ge.f32.partialorder %v1209, 0.0
    %v1214 = vmul.f32 %v1204, 0.2
    %v1215 = vmul.f32 %v1209, 0.2
    %v1216 = vsel %vm1212, %v1204, %v1214
    %v1217 = vsel %vm1213, %v1209, %v1215
    %s1218 = scalar_lea.vmem [#allocation7], 1536
    %v1219 = vld [vmem:[%s1218] sm:$0xff]
    %v1220 = vld [vmem:[%s1218 + $0x8] sm:$0xff]
    %v1221 = vld [vmem:[%s1218 + $0x10] sm:$0xff]
    %v1222 = vld [vmem:[%s1218 + $0x18] sm:$0xff]
    %v1223 = vld [vmem:[%s1218 + $0x20] sm:$0xff]
    %v1224 = vld [vmem:[%s1218 + $0x28] sm:$0xff]
    %v1225 = vld [vmem:[%s1218 + $0x30] sm:$0xff]
    %v1226 = vld [vmem:[%s1218 + $0x38] sm:$0xff]
    %v1227 = vld [vmem:[%s1218 + $0x40] sm:$0xff]
    %v1228 = vld [vmem:[%s1218 + $0x48] sm:$0xff]
    %v1229 = vld [vmem:[%s1218 + $0x50] sm:$0xff]
    %v1230 = vld [vmem:[%s1218 + $0x58] sm:$0xff]
    %v1231 = vld [vmem:[%s1218 + $0x60] sm:$0xff]
    %v1232 = vld [vmem:[%s1218 + $0x68] sm:$0xff]
    %v1233 = vld [vmem:[%s1218 + $0x70] sm:$0xff]
    %v1234 = vld [vmem:[%s1218 + $0x78] sm:$0xff]
    %v1235 = vld [vmem:[%s1218 + $0x80] sm:$0xff]
    %v1236 = vld [vmem:[%s1218 + $0x88] sm:$0xff]
    %v1237 = vld [vmem:[%s1218 + $0x90] sm:$0xff]
    %v1238 = vld [vmem:[%s1218 + $0x98] sm:$0xff]
    %v1239 = vld [vmem:[%s1218 + $0xa0] sm:$0xff]
    %v1240 = vld [vmem:[%s1218 + $0xa8] sm:$0xff]
    %v1241 = vld [vmem:[%s1218 + $0xb0] sm:$0xff]
    %v1242 = vld [vmem:[%s1218 + $0xb8] sm:$0xff]
    %v1243 = vld [vmem:[%s1218 + $0xc0] sm:$0xff]
    %v1244 = vld [vmem:[%s1218 + $0xc8] sm:$0xff]
    %v1245 = vld [vmem:[%s1218 + $0xd0] sm:$0xff]
    %v1246 = vld [vmem:[%s1218 + $0xd8] sm:$0xff]
    %v1247 = vld [vmem:[%s1218 + $0xe0] sm:$0xff]
    %v1248 = vld [vmem:[%s1218 + $0xe8] sm:$0xff]
    %v1249 = vld [vmem:[%s1218 + $0xf0] sm:$0xff]
    %v1250 = vld [vmem:[%s1218 + $0xf8] sm:$0xff]
    %v1251 = vld [vmem:[%s1218 + $0x100] sm:$0xff]
    %v1252 = vld [vmem:[%s1218 + $0x108] sm:$0xff]
    %v1253 = vld [vmem:[%s1218 + $0x110] sm:$0xff]
    %v1254 = vld [vmem:[%s1218 + $0x118] sm:$0xff]
    %v1255 = vld [vmem:[%s1218 + $0x120] sm:$0xff]
    %v1256 = vld [vmem:[%s1218 + $0x128] sm:$0xff]
    %v1257 = vld [vmem:[%s1218 + $0x130] sm:$0xff]
    %v1258 = vld [vmem:[%s1218 + $0x138] sm:$0xff]
    %v1259 = vld [vmem:[%s1218 + $0x140] sm:$0xff]
    %v1260 = vld [vmem:[%s1218 + $0x148] sm:$0xff]
    %v1261 = vld [vmem:[%s1218 + $0x150] sm:$0xff]
    %v1262 = vld [vmem:[%s1218 + $0x158] sm:$0xff]
    %v1263 = vld [vmem:[%s1218 + $0x160] sm:$0xff]
    %v1264 = vld [vmem:[%s1218 + $0x168] sm:$0xff]
    %v1265 = vld [vmem:[%s1218 + $0x170] sm:$0xff]
    %v1266 = vld [vmem:[%s1218 + $0x178] sm:$0xff]
    %v1267 = vld [vmem:[#allocation8 + $0x5] sm:$0x1]
    %v1268 = vrot.slane %v1216, 7
    %v1269 = vrot.slane %v1217, 7
    %v1270 = vsel %vm155, %v1268, %v1269
    %v1271 = vsel %vm155, %v1269, %v1268
    %v1272 = vsel %vm160, 0.0, %v1271
    %v1273 = vsel %vm161, 0.0, %v1270
    %v1274 = vrot.slane %v1216, 1
    %v1275 = vrot.slane %v1217, 1
    %v1276 = vsel %vm166, %v1274, %v1275
    %v1277 = vsel %vm166, %v1275, %v1274
    %v1278 = vsel %vm171, 0.0, %v1276
    %v1279 = vsel %vm172, 0.0, %v1277
    %v1280 = vlaneseq
    %v1281 = vshrl.u32 %v1280, 7
    %v1282 = vsub.s32 0, %v1281
    %v1283 = vrot.slane %v1267, %v1282
    %1284 = vmatprep.subr.mxu0 0.0
    %1285 = vmatpush1.msra.mxu0 %v1234
    %1286 = vmatprep.subr.mxu0 0.0
    %1287 = vmatpush1.msra.mxu0 %v1233
    %1288 = vmatprep.subr.mxu0 0.0
    %1289 = vmatpush1.msra.mxu0 %v1232
    %1290 = vmatprep.subr.mxu0 0.0
    %1291 = vmatpush1.msra.mxu0 %v1231
    %1292 = vmatprep.subr.mxu0 0.0
    %1293 = vmatpush1.msra.mxu0 %v1230
    %1294 = vmatprep.subr.mxu0 0.0
    %1295 = vmatpush1.msra.mxu0 %v1229
    %1296 = vmatprep.subr.mxu0 0.0
    %1297 = vmatpush1.msra.mxu0 %v1228
    %1298 = vmatprep.subr.mxu0 0.0
    %1299 = vmatpush1.msra.mxu0 %v1227
    %1300 = vmatprep.subr.mxu0 0.0
    %1301 = vmatpush1.msra.mxu0 %v1226
    %1302 = vmatprep.subr.mxu0 0.0
    %1303 = vmatpush1.msra.mxu0 %v1225
    %1304 = vmatprep.subr.mxu0 0.0
    %1305 = vmatpush1.msra.mxu0 %v1224
    %1306 = vmatprep.subr.mxu0 0.0
    %1307 = vmatpush1.msra.mxu0 %v1223
    %1308 = vmatprep.subr.mxu0 0.0
    %1309 = vmatpush1.msra.mxu0 %v1222
    %1310 = vmatprep.subr.mxu0 0.0
    %1311 = vmatpush1.msra.mxu0 %v1221
    %1312 = vmatprep.subr.mxu0 0.0
    %1313 = vmatpush1.msra.mxu0 %v1220
    %1314 = vmatprep.subr.mxu0 0.0
    %1315 = vmatpush1.msra.mxu0 %v1219
    %1316 = vmatprep.subr.mxu0 0.0
    %1317 = vmatpush2.msra.mxu0 %v1250
    %1318 = vmatprep.subr.mxu0 0.0
    %1319 = vmatpush2.msra.mxu0 %v1249
    %1320 = vmatprep.subr.mxu0 0.0
    %1321 = vmatpush2.msra.mxu0 %v1248
    %1322 = vmatprep.subr.mxu0 0.0
    %1323 = vmatpush2.msra.mxu0 %v1247
    %1324 = vmatprep.subr.mxu0 0.0
    %1325 = vmatpush2.msra.mxu0 %v1246
    %1326 = vmatprep.subr.mxu0 0.0
    %1327 = vmatpush2.msra.mxu0 %v1245
    %1328 = vmatprep.subr.mxu0 0.0
    %1329 = vmatpush2.msra.mxu0 %v1244
    %1330 = vmatprep.subr.mxu0 0.0
    %1331 = vmatpush2.msra.mxu0 %v1243
    %1332 = vmatprep.subr.mxu0 0.0
    %1333 = vmatpush2.msra.mxu0 %v1242
    %1334 = vmatprep.subr.mxu0 0.0
    %1335 = vmatpush2.msra.mxu0 %v1241
    %1336 = vmatprep.subr.mxu0 0.0
    %1337 = vmatpush2.msra.mxu0 %v1240
    %1338 = vmatprep.subr.mxu0 0.0
    %1339 = vmatpush2.msra.mxu0 %v1239
    %1340 = vmatprep.subr.mxu0 0.0
    %1341 = vmatpush2.msra.mxu0 %v1238
    %1342 = vmatprep.subr.mxu0 0.0
    %1343 = vmatpush2.msra.mxu0 %v1237
    %1344 = vmatprep.subr.mxu0 0.0
    %1345 = vmatpush2.msra.mxu0 %v1236
    %1346 = vmatprep.subr.mxu0 0.0
    %1347 = vmatpush2.msra.mxu0 %v1235
    %1348 = vmatprep.mubr.f32.mxu0 %v1216
    %1349 = vmatmul.mubr.f32.gmra.mxu0 %v1272
    %v1350 = vpop.f32.mrf.mxu0
    %v1351 = vadd.f32 %v1283, %v1350
    %v1352 = vpop.f32.mrf.mxu0
    %1353 = vmatprep.mubr.f32.mxu0 %v1217
    %1354 = vmatmul.mubr.f32.gmra.mxu0 %v1273
    %v1355 = vpop.f32.mrf.mxu0
    %v1356 = vadd.f32 %v1283, %v1355
    %v1357 = vpop.f32.mrf.mxu0
    %1358 = vdwg.mxu0
    %1359 = vmatprep.subr.mxu0 0.0
    %1360 = vmatpush1.msra.mxu0 %v1266
    %1361 = vmatprep.subr.mxu0 0.0
    %1362 = vmatpush1.msra.mxu0 %v1265
    %1363 = vmatprep.subr.mxu0 0.0
    %1364 = vmatpush1.msra.mxu0 %v1264
    %1365 = vmatprep.subr.mxu0 0.0
    %1366 = vmatpush1.msra.mxu0 %v1263
    %1367 = vmatprep.subr.mxu0 0.0
    %1368 = vmatpush1.msra.mxu0 %v1262
    %1369 = vmatprep.subr.mxu0 0.0
    %1370 = vmatpush1.msra.mxu0 %v1261
    %1371 = vmatprep.subr.mxu0 0.0
    %1372 = vmatpush1.msra.mxu0 %v1260
    %1373 = vmatprep.subr.mxu0 0.0
    %1374 = vmatpush1.msra.mxu0 %v1259
    %1375 = vmatprep.subr.mxu0 0.0
    %1376 = vmatpush1.msra.mxu0 %v1258
    %1377 = vmatprep.subr.mxu0 0.0
    %1378 = vmatpush1.msra.mxu0 %v1257
    %1379 = vmatprep.subr.mxu0 0.0
    %1380 = vmatpush1.msra.mxu0 %v1256
    %1381 = vmatprep.subr.mxu0 0.0
    %1382 = vmatpush1.msra.mxu0 %v1255
    %1383 = vmatprep.subr.mxu0 0.0
    %1384 = vmatpush1.msra.mxu0 %v1254
    %1385 = vmatprep.subr.mxu0 0.0
    %1386 = vmatpush1.msra.mxu0 %v1253
    %1387 = vmatprep.subr.mxu0 0.0
    %1388 = vmatpush1.msra.mxu0 %v1252
    %1389 = vmatprep.subr.mxu0 0.0
    %1390 = vmatpush1.msra.mxu0 %v1251
    %1391 = vmatprep.subr.mxu0 0.0
    %1392 = vmatpush2.msra.mxu0 0.0
    %1393 = vmatprep.subr.mxu0 0.0
    %1394 = vmatpush2.msra.mxu0 0.0
    %1395 = vmatprep.subr.mxu0 0.0
    %1396 = vmatpush2.msra.mxu0 0.0
    %1397 = vmatprep.subr.mxu0 0.0
    %1398 = vmatpush2.msra.mxu0 0.0
    %1399 = vmatprep.subr.mxu0 0.0
    %1400 = vmatpush2.msra.mxu0 0.0
    %1401 = vmatprep.subr.mxu0 0.0
    %1402 = vmatpush2.msra.mxu0 0.0
    %1403 = vmatprep.subr.mxu0 0.0
    %1404 = vmatpush2.msra.mxu0 0.0
    %1405 = vmatprep.subr.mxu0 0.0
    %1406 = vmatpush2.msra.mxu0 0.0
    %1407 = vmatprep.subr.mxu0 0.0
    %1408 = vmatpush2.msra.mxu0 0.0
    %1409 = vmatprep.subr.mxu0 0.0
    %1410 = vmatpush2.msra.mxu0 0.0
    %1411 = vmatprep.subr.mxu0 0.0
    %1412 = vmatpush2.msra.mxu0 0.0
    %1413 = vmatprep.subr.mxu0 0.0
    %1414 = vmatpush2.msra.mxu0 0.0
    %1415 = vmatprep.subr.mxu0 0.0
    %1416 = vmatpush2.msra.mxu0 0.0
    %1417 = vmatprep.subr.mxu0 0.0
    %1418 = vmatpush2.msra.mxu0 0.0
    %1419 = vmatprep.subr.mxu0 0.0
    %1420 = vmatpush2.msra.mxu0 0.0
    %1421 = vmatprep.subr.mxu0 0.0
    %1422 = vmatpush2.msra.mxu0 0.0
    %1423 = vmatprep.mubr.f32.mxu0 0.0
    %1424 = vmatmul.mubr.f32.gmra.mxu0 %v1278
    %v1425 = vpop.f32.mrf.mxu0
    %v1426 = vadd.f32 %v1351, %v1425
    %v1427 = vpop.f32.mrf.mxu0
    %1428 = vmatprep.mubr.f32.mxu0 0.0
    %1429 = vmatmul.mubr.f32.gmra.mxu0 %v1279
    %v1430 = vpop.f32.mrf.mxu0
    %v1431 = vadd.f32 %v1356, %v1430
    %v1432 = vpop.f32.mrf.mxu0
    %1433 = vdwg.mxu0
    %v1434 = vadd.f32 %v1426, %v994
    %v1435 = vadd.f32 %v1431, %v995
    %1436 = vst [vmem:[#allocation10] sm:$0xff] %v1434
    %1437 = vst [vmem:[#allocation10 + $0x8] sm:$0xff] %v1435
    // Predicated region
    $region34: #{tpu_custom_call.1} parent=1 // pred_check
      _
    $region35: #{tpu_custom_call.1} parent=1 // pred_check_branch
      %1439 = sbr.rel (0) target = $region37
    $region36: #{tpu_custom_call.1} parent=1 // pred_region
      %s1441 = ssub.s32 256, 256
      %1442 = vsyncadd [#allocation4], %s1441
      %s1443 = sshll.u32 [#allocation10], 4
      %s1444 = int_to_ptr.vmem [resolvable:$true] %s1443
      %1449 = dma.vmem_to_hbm [thread:$0]  %s1444, 256, %s4, [#allocation4], 128, 128, 8
    $region37: #{tpu_custom_call.1} parent=1 // pred_fallthru
      _
    // Predicated region
    $region38: #{tpu_custom_call.1} parent=1 // pred_check
      _
    $region39: #{tpu_custom_call.1} parent=1 // pred_check_branch
      %1451 = sbr.rel (0) target = $region41
    $region40: #{tpu_custom_call.1} parent=1 // pred_region
      %1452 = dma.done [#allocation4], 256
    $region41: #{tpu_custom_call.1} parent=1 // pred_fallthru
      _
    %1453 = vsyncpa [#allocation3], 1
    %1454 = vsyncpa [#allocation6], 1
    %1455 = vsyncpa [#allocation9], 1
    %1456 = vsyncpa [#allocation4], 1

</llo_original>
